<compile_context>
chip_gen: v7x
topology: tpu7x:2x2x1
jax: 0.10.0
libtpu: 0.0.40
codegen_flags: <defaults>
</compile_context>

<pallas_src>
import functools

import jax
import jax.numpy as jnp
from jax import lax
from jax.experimental import pallas as pl
from jax.experimental.pallas import tpu as pltpu


# ---------------------------------------------------------------------------
# In-kernel 3x3 "same" conv, channel-major, as 9 accumulating MXU matmuls.
# ---------------------------------------------------------------------------
def _conv3x3_acc(a_f32, w_ref, col_idx, W, cdtype):
    """a_f32: (C, H*W) f32 activation (rows flattened, W fastest).
    w_ref:   (9, Cout, C) weights in `cdtype`, tap-major (t = ky*3 + kx).
    col_idx: (1, H*W) int32 pixel-column index (iota % W), hoisted by caller.
    Returns (Cout, H*W) f32.
    """
    C, HW = a_f32.shape
    pad = W + 1
    # Column-masked copies bake the +-1 dx halo into the source buffers:
    #   dx = -1 taps read a_l (last image column zeroed),
    #   dx = +1 taps read a_r (first image column zeroed).
    # Masks are done in f32 (v5e-safe), cast to the MXU dtype right after.
    a_c = a_f32.astype(cdtype)
    a_l = jnp.where(col_idx < (W - 1), a_f32, 0.0).astype(cdtype)
    a_r = jnp.where(col_idx > 0, a_f32, 0.0).astype(cdtype)
    z = jnp.zeros((C, pad), cdtype)                      # +-1 dy (row) halo
    bufs = {
        -1: jnp.concatenate([z, a_l, z], axis=1),        # (C, HW + 2*(W+1))
        0:  jnp.concatenate([z, a_c, z], axis=1),
        1:  jnp.concatenate([z, a_r, z], axis=1),
    }
    acc = None
    for ky in range(3):
        for kx in range(3):
            dy, dx = ky - 1, kx - 1
            start = pad + dy * W + dx                    # static offset
            tap = bufs[dx][:, start:start + HW]          # pure shifted view
            part = jnp.dot(w_ref[ky * 3 + kx], tap,
                           preferred_element_type=jnp.float32)
            acc = part if acc is None else acc + part
    return acc                                           # (Cout, HW) f32


# ---------------------------------------------------------------------------
# Fused PreActBlock kernel: BN1+ReLU -> shortcut -> conv1 -> BN2+ReLU -> conv2.
# ---------------------------------------------------------------------------
def _preact_block_kernel(*refs, W, B, has_proj, compute_dtype):
    if has_proj:
        (x_ref, s1_ref, b1_ref, w1_ref, s2_ref, b2_ref, w2_ref, wsc_ref,
         o_ref) = refs
    else:
        (x_ref, s1_ref, b1_ref, w1_ref, s2_ref, b2_ref, w2_ref, o_ref) = refs
        wsc_ref = None

    HW = x_ref.shape[-1]
    # Hoisted once per grid step (not per image / per conv).
    col_idx = lax.broadcasted_iota(jnp.int32, (1, HW), 1) % W

    s1 = s1_ref[...]
    b1 = b1_ref[...]
    s2 = s2_ref[...]
    b2 = b2_ref[...]
    wsc = wsc_ref[...] if has_proj else None

    for b in range(B):                          # static unroll over images
        x = x_ref[b].astype(jnp.float32)        # (Cin, HW); upcast after DMA
        a = jnp.maximum(x * s1 + b1, 0.0)       # relu(bn1(x)), f32 VPU
        if has_proj:                            # fused 1x1 projection shortcut
            sc = jnp.dot(wsc, a.astype(compute_dtype),
                         preferred_element_type=jnp.float32)
        else:
            sc = x                              # identity (Cin == Cout)
        y = _conv3x3_acc(a, w1_ref, col_idx, W, compute_dtype)   # conv1
        y = jnp.maximum(y * s2 + b2, 0.0)                        # relu(bn2)
        y = _conv3x3_acc(y, w2_ref, col_idx, W, compute_dtype)   # conv2
        o_ref[b] = (y + sc).astype(o_ref.dtype)                  # lane-dense


# ---------------------------------------------------------------------------
# Wrapper helpers.
# ---------------------------------------------------------------------------
def _fold_bn(gamma, beta, mean, var, eps=1e-5):
    gamma = gamma.astype(jnp.float32)
    beta = beta.astype(jnp.float32)
    mean = mean.astype(jnp.float32)
    var = var.astype(jnp.float32)
    scale = gamma / jnp.sqrt(var + eps)
    bias = beta - mean * scale
    return scale, bias


def _pick_images_per_step(N, Cin, Cout, HW, x_bytes, out_bytes):
    """Largest divisor of N (<=8) keeping blocks ~<=1 MiB and >=2 grid steps."""
    target = 1 << 20
    best = 1
    for b in range(1, min(N, 8) + 1):
        if N % b:
            continue
        if N // b < min(2, N):           # keep >=2 steps (v7x: 2 TensorCores)
            continue
        if b * HW * max(Cin * x_bytes, Cout * out_bytes) <= target:
            best = b
    return best


def _vmem_limit_bytes(B, Cin, Cout, HW, W, x_bytes, out_bytes, c_bytes):
    pad_hw = HW + 2 * (W + 1)
    io_blocks = 2 * B * Cin * HW * x_bytes + 2 * B * Cout * HW * out_bytes
    weights = (9 * Cin * Cout + 9 * Cout * Cout + Cin * Cout) * c_bytes \
        + 2 * (Cin + Cout) * 4
    # Per-image in-kernel temporaries: f32 activations, halo buffers in the
    # MXU dtype, shifted tap views, f32 accumulator + shortcut.
    temps = (Cin + Cout) * HW * 4 \
        + 3 * max(Cin, Cout) * pad_hw * c_bytes \
        + 2 * max(Cin, Cout) * HW * c_bytes \
        + 2 * Cout * HW * 4
    total = io_blocks + 2 * weights + 4 * temps          # generous headroom
    return int(min(64 * 2 ** 20, max(total, 32 * 2 ** 20)))   # v7x-safe cap


# ---------------------------------------------------------------------------
# Wrapper: NCHW in / NCHW out (matches the PyTorch module). Only free reshapes.
# ---------------------------------------------------------------------------
def preact_block_forward(x_nchw, params, stride=1, compute_dtype=jnp.bfloat16):
    assert stride == 1, "TODO(synk): stride > 1 not implemented in the kernel"
    N, Cin, H, W = x_nchw.shape
    HW = H * W

    w1_oihw = params["w1_oihw"]
    w2_oihw = params["w2_oihw"]
    Cout = w1_oihw.shape[0]
    has_proj = "w_sc_oihw" in params
    if not has_proj:
        assert Cin == Cout, "identity shortcut requires in_planes == planes"

    s1, b1 = _fold_bn(params["bn1_gamma"], params["bn1_beta"],
                      params["bn1_mean"], params["bn1_var"])
    s2, b2 = _fold_bn(params["bn2_gamma"], params["bn2_beta"],
                      params["bn2_mean"], params["bn2_var"])
    s1 = s1.reshape(Cin, 1)
    b1 = b1.reshape(Cin, 1)
    s2 = s2.reshape(Cout, 1)
    b2 = b2.reshape(Cout, 1)

    # (O, I, 3, 3) -> (ky, kx, O, I) -> (9, O, I): tap-major, MXU dtype.
    w1t = jnp.transpose(w1_oihw, (2, 3, 0, 1)).reshape(9, Cout, Cin)
    w2t = jnp.transpose(w2_oihw, (2, 3, 0, 1)).reshape(9, Cout, Cout)
    w1t = w1t.astype(compute_dtype)
    w2t = w2t.astype(compute_dtype)

    x2 = x_nchw.reshape(N, Cin, HW)              # free reshape, native dtype
    out_dtype = x_nchw.dtype
    x_bytes = jnp.dtype(x_nchw.dtype).itemsize
    out_bytes = jnp.dtype(out_dtype).itemsize
    c_bytes = jnp.dtype(compute_dtype).itemsize

    B = _pick_images_per_step(N, Cin, Cout, HW, x_bytes, out_bytes)

    args = [x2, s1, b1, w1t, s2, b2, w2t]
    # Whole-array VMEM blocks for weights/scales: constant block -> fetched
    # once for the whole grid (single-buffered, no per-step re-DMA).
    const_spec = pl.BlockSpec(memory_space=pltpu.MemorySpace.VMEM)
    in_specs = [pl.BlockSpec((B, Cin, HW), lambda n: (n, 0, 0))] \
        + [const_spec] * 6
    if has_proj:
        wsc = params["w_sc_oihw"][:, :, 0, 0].astype(compute_dtype)
        args.append(wsc)
        in_specs.append(const_spec)

    kernel = functools.partial(_preact_block_kernel, W=W, B=B,
                               has_proj=has_proj, compute_dtype=compute_dtype)

    out = pl.pallas_call(
        kernel,
        out_shape=jax.ShapeDtypeStruct((N, Cout, HW), out_dtype),
        grid=(N // B,),
        in_specs=in_specs,
        out_specs=pl.BlockSpec((B, Cout, HW), lambda n: (n, 0, 0)),
        compiler_params=pltpu.CompilerParams(
            dimension_semantics=("parallel",),
            vmem_limit_bytes=_vmem_limit_bytes(
                B, Cin, Cout, HW, W, x_bytes, out_bytes, c_bytes)),
    )(*args)

    return out.reshape(N, Cout, H, W)            # free reshape


# ---------------------------------------------------------------------------
# Pure-JAX reference (mirrors the PyTorch forward, eval-mode BN).
# ---------------------------------------------------------------------------
def reference_forward(x, p):
    def bn(t, g, b, m, v, eps=1e-5):
        s = (g / jnp.sqrt(v + eps))[None, :, None, None]
        return (t - m[None, :, None, None]) * s + b[None, :, None, None]

    conv = functools.partial(
        lax.conv_general_dilated,
        dimension_numbers=("NCHW", "OIHW", "NCHW"),
        precision=lax.Precision.HIGHEST)

    out = jax.nn.relu(bn(x, p["bn1_gamma"], p["bn1_beta"],
                         p["bn1_mean"], p["bn1_var"]))
    if "w_sc_oihw" in p:
        shortcut = conv(out, p["w_sc_oihw"], (1, 1), "VALID")
    else:
        shortcut = x
    y = conv(out, p["w1_oihw"], (1, 1), ((1, 1), (1, 1)))
    y = jax.nn.relu(bn(y, p["bn2_gamma"], p["bn2_beta"],
                       p["bn2_mean"], p["bn2_var"]))
    y = conv(y, p["w2_oihw"], (1, 1), ((1, 1), (1, 1)))
    return y + shortcut


def _make_params(key, in_planes, planes, with_proj):
    ks = jax.random.split(key, 12)
    p = {
        "w1_oihw": 0.1 * jax.random.normal(ks[0], (planes, in_planes, 3, 3),
                                           jnp.float32),
        "w2_oihw": 0.1 * jax.random.normal(ks[1], (planes, planes, 3, 3),
                                           jnp.float32),
        "bn1_gamma": jax.random.uniform(ks[3], (in_planes,), minval=0.5, maxval=1.5),
        "bn1_beta": 0.1 * jax.random.normal(ks[4], (in_planes,)),
        "bn1_mean": 0.1 * jax.random.normal(ks[5], (in_planes,)),
        "bn1_var": jax.random.uniform(ks[6], (in_planes,), minval=0.5, maxval=1.5),
        "bn2_gamma": jax.random.uniform(ks[7], (planes,), minval=0.5, maxval=1.5),
        "bn2_beta": 0.1 * jax.random.normal(ks[8], (planes,)),
        "bn2_mean": 0.1 * jax.random.normal(ks[9], (planes,)),
        "bn2_var": jax.random.uniform(ks[10], (planes,), minval=0.5, maxval=1.5),
    }
    if with_proj:
        p["w_sc_oihw"] = 0.1 * jax.random.normal(
            ks[2], (planes, in_planes, 1, 1), jnp.float32)
    return p


if __name__ == "__main__":
    key = jax.random.PRNGKey(0)
    kp, kx, kp2, kx2 = jax.random.split(key, 4)

    # Case 1: in_planes != planes -> 1x1 projection shortcut.
    N, in_planes, planes, Hs, Ws = 2, 4, 8, 16, 16
    params = _make_params(kp, in_planes, planes, with_proj=True)
    x = jax.random.normal(kx, (N, in_planes, Hs, Ws), jnp.float32)
    ref = jax.block_until_ready(reference_forward(x, params))

    # f32 MXU path: checks the conv/halo indexing (tolerance covers MXU f32
    # multi-pass emulation).
    out_f32 = jax.block_until_ready(
        preact_block_forward(x, params, compute_dtype=jnp.float32))
    assert out_f32.shape == (N, planes, Hs, Ws), out_f32.shape
    assert jnp.allclose(out_f32, ref, atol=1e-2, rtol=1e-2), (
        float(jnp.max(jnp.abs(out_f32 - ref))))

    # bf16 MXU path (default, v6e/v7x-friendly): ~1e-2-level differences
    # expected vs the f32 reference (f32 accumulation bounds the error).
    out_bf16 = jax.block_until_ready(preact_block_forward(x, params))
    assert jnp.allclose(out_bf16, ref, atol=5e-2, rtol=5e-2), (
        float(jnp.max(jnp.abs(out_bf16 - ref))))

    # Case 2: in_planes == planes -> identity shortcut path.
    params2 = _make_params(kp2, planes, planes, with_proj=False)
    x2 = jax.random.normal(kx2, (N, planes, Hs, Ws), jnp.float32)
    ref2 = jax.block_until_ready(reference_forward(x2, params2))
    out2 = jax.block_until_ready(
        preact_block_forward(x2, params2, compute_dtype=jnp.float32))
    assert jnp.allclose(out2, ref2, atol=1e-2, rtol=1e-2), (
        float(jnp.max(jnp.abs(out2 - ref2))))

    print("KERNEL_OK")
</pallas_src>

<mosaic_0001>
module attributes {stable_mosaic.version = 11 : i64} {
  func.func @_preact_block_kernel(%arg0: i32, %arg1: memref<1x4x256xf32, #tpu.memory_space<vmem>>, %arg2: memref<4x1xf32, #tpu.memory_space<vmem>>, %arg3: memref<4x1xf32, #tpu.memory_space<vmem>>, %arg4: memref<9x8x4xf32, #tpu.memory_space<vmem>>, %arg5: memref<8x1xf32, #tpu.memory_space<vmem>>, %arg6: memref<8x1xf32, #tpu.memory_space<vmem>>, %arg7: memref<9x8x8xf32, #tpu.memory_space<vmem>>, %arg8: memref<8x4xf32, #tpu.memory_space<vmem>>, %arg9: memref<1x8x256xf32, #tpu.memory_space<vmem>>) attributes {dimension_semantics = [#tpu.dimension_semantics<parallel>], iteration_bounds = array<i64: 2>, scalar_prefetch = 0 : i64, scratch_operands = 0 : i64, tpu.core_type = #tpu.core_type<tc>, window_params = [{transform_indices = @transform_0, window_bounds = array<i64: 1, 4, 256>}, {pipeline_mode = #tpu.pipeline_mode<synchronous>, transform_indices = @transform_1, window_bounds = array<i64: 4, 1>}, {pipeline_mode = #tpu.pipeline_mode<synchronous>, transform_indices = @transform_2, window_bounds = array<i64: 4, 1>}, {pipeline_mode = #tpu.pipeline_mode<synchronous>, transform_indices = @transform_3, window_bounds = array<i64: 9, 8, 4>}, {pipeline_mode = #tpu.pipeline_mode<synchronous>, transform_indices = @transform_4, window_bounds = array<i64: 8, 1>}, {pipeline_mode = #tpu.pipeline_mode<synchronous>, transform_indices = @transform_5, window_bounds = array<i64: 8, 1>}, {pipeline_mode = #tpu.pipeline_mode<synchronous>, transform_indices = @transform_6, window_bounds = array<i64: 9, 8, 8>}, {pipeline_mode = #tpu.pipeline_mode<synchronous>, transform_indices = @transform_7, window_bounds = array<i64: 8, 4>}, {transform_indices = @transform_8, window_bounds = array<i64: 1, 8, 256>}]} {
    %0 = tpu.iota {dimensions = array<i32: 1>} : vector<1x256xi32>
    %c16_i32 = arith.constant 16 : i32
    %c0_i32 = arith.constant 0 : i32
    %1 = arith.cmpi eq, %c16_i32, %c0_i32 : i32
    %c1_i32 = arith.constant 1 : i32
    %2 = arith.select %1, %c1_i32, %c16_i32 : i32
    %3 = vector.broadcast %2 : i32 to vector<1x256xi32>
    %4 = arith.remsi %0, %3 : vector<1x256xi32>
    %c0_i32_0 = arith.constant 0 : i32
    %5 = vector.broadcast %c0_i32_0 : i32 to vector<1x256xi32>
    %6 = arith.cmpi ne, %4, %5 : vector<1x256xi32>
    %c0_i32_1 = arith.constant 0 : i32
    %7 = vector.broadcast %c0_i32_1 : i32 to vector<1x256xi32>
    %8 = arith.cmpi slt, %4, %7 : vector<1x256xi32>
    %c0_i32_2 = arith.constant 0 : i32
    %9 = arith.cmpi slt, %2, %c0_i32_2 : i32
    %10 = vector.broadcast %9 : i1 to vector<1x256xi1>
    %11 = vector.broadcast %10 : vector<1x256xi1> to vector<1x256xi1>
    %12 = arith.xori %8, %11 : vector<1x256xi1>
    %13 = arith.andi %12, %6 : vector<1x256xi1>
    %14 = vector.broadcast %2 : i32 to vector<1x256xi32>
    %15 = arith.addi %4, %14 : vector<1x256xi32>
    %16 = arith.select %13, %15, %4 : vector<1x256xi1>, vector<1x256xi32>
    %c0 = arith.constant 0 : index
    %c0_3 = arith.constant 0 : index
    %17 = vector.load %arg2[%c0, %c0_3] : memref<4x1xf32, #tpu.memory_space<vmem>>, vector<4x1xf32>
    %c0_4 = arith.constant 0 : index
    %c0_5 = arith.constant 0 : index
    %18 = vector.load %arg3[%c0_4, %c0_5] : memref<4x1xf32, #tpu.memory_space<vmem>>, vector<4x1xf32>
    %c0_6 = arith.constant 0 : index
    %c0_7 = arith.constant 0 : index
    %19 = vector.load %arg5[%c0_6, %c0_7] : memref<8x1xf32, #tpu.memory_space<vmem>>, vector<8x1xf32>
    %c0_8 = arith.constant 0 : index
    %c0_9 = arith.constant 0 : index
    %20 = vector.load %arg6[%c0_8, %c0_9] : memref<8x1xf32, #tpu.memory_space<vmem>>, vector<8x1xf32>
    %c0_10 = arith.constant 0 : index
    %c0_11 = arith.constant 0 : index
    %21 = vector.load %arg8[%c0_10, %c0_11] : memref<8x4xf32, #tpu.memory_space<vmem>>, vector<8x4xf32>
    %c0_12 = arith.constant 0 : index
    %c0_13 = arith.constant 0 : index
    %c0_14 = arith.constant 0 : index
    %22 = vector.load %arg1[%c0_12, %c0_13, %c0_14] : memref<1x4x256xf32, #tpu.memory_space<vmem>>, vector<1x4x256xf32>
    %23 = vector.shape_cast %22 : vector<1x4x256xf32> to vector<4x256xf32>
    %24 = vector.broadcast %17 : vector<4x1xf32> to vector<4x256xf32>
    %25 = arith.mulf %23, %24 : vector<4x256xf32>
    %26 = vector.broadcast %18 : vector<4x1xf32> to vector<4x256xf32>
    %27 = arith.addf %25, %26 : vector<4x256xf32>
    %cst = arith.constant 0.000000e+00 : f32
    %28 = vector.broadcast %cst : f32 to vector<4x256xf32>
    %29 = arith.maximumf %27, %28 : vector<4x256xf32>
    %cst_15 = arith.constant dense<0.000000e+00> : vector<8x256xf32>
    %30 = tpu.matmul %21, %29, %cst_15 {dimension_numbers = #tpu.dot_dimension_numbers<[1], [0], [0], [1], [0, 0, 1, 1], [], []>} : vector<8x4xf32>, vector<4x256xf32>, vector<8x256xf32> -> vector<8x256xf32>
    %c15_i32 = arith.constant 15 : i32
    %31 = vector.broadcast %c15_i32 : i32 to vector<1x256xi32>
    %32 = arith.cmpi slt, %16, %31 : vector<1x256xi32>
    %cst_16 = arith.constant 0.000000e+00 : f32
    %33 = vector.shape_cast %32 : vector<1x256xi1> to vector<1x256xi1>
    %34 = vector.broadcast %33 : vector<1x256xi1> to vector<4x256xi1>
    %35 = vector.broadcast %cst_16 : f32 to vector<4x256xf32>
    %36 = arith.select %34, %29, %35 : vector<4x256xi1>, vector<4x256xf32>
    %c0_i32_17 = arith.constant 0 : i32
    %37 = vector.broadcast %c0_i32_17 : i32 to vector<1x256xi32>
    %38 = arith.cmpi sgt, %16, %37 : vector<1x256xi32>
    %cst_18 = arith.constant 0.000000e+00 : f32
    %39 = vector.shape_cast %38 : vector<1x256xi1> to vector<1x256xi1>
    %40 = vector.broadcast %39 : vector<1x256xi1> to vector<4x256xi1>
    %41 = vector.broadcast %cst_18 : f32 to vector<4x256xf32>
    %42 = arith.select %40, %29, %41 : vector<4x256xi1>, vector<4x256xf32>
    %cst_19 = arith.constant 0.000000e+00 : f32
    %43 = vector.broadcast %cst_19 : f32 to vector<4x17xf32>
    %44 = tpu.concatenate %43, %36, %43 in 1 : vector<4x17xf32>, vector<4x256xf32>, vector<4x17xf32> -> vector<4x290xf32>
    %45 = tpu.concatenate %43, %29, %43 in 1 : vector<4x17xf32>, vector<4x256xf32>, vector<4x17xf32> -> vector<4x290xf32>
    %46 = tpu.concatenate %43, %42, %43 in 1 : vector<4x17xf32>, vector<4x256xf32>, vector<4x17xf32> -> vector<4x290xf32>
    %47 = vector.extract_strided_slice %44 {offsets = [0, 0], sizes = [4, 256], strides = [1, 1]} : vector<4x290xf32> to vector<4x256xf32>
    %c0_20 = arith.constant 0 : index
    %c0_21 = arith.constant 0 : index
    %c0_22 = arith.constant 0 : index
    %48 = vector.load %arg4[%c0_20, %c0_21, %c0_22] : memref<9x8x4xf32, #tpu.memory_space<vmem>>, vector<1x8x4xf32>
    %49 = vector.shape_cast %48 : vector<1x8x4xf32> to vector<8x4xf32>
    %cst_23 = arith.constant dense<0.000000e+00> : vector<8x256xf32>
    %50 = tpu.matmul %49, %47, %cst_23 {dimension_numbers = #tpu.dot_dimension_numbers<[1], [0], [0], [1], [0, 0, 1, 1], [], []>} : vector<8x4xf32>, vector<4x256xf32>, vector<8x256xf32> -> vector<8x256xf32>
    %51 = vector.extract_strided_slice %45 {offsets = [0, 1], sizes = [4, 256], strides = [1, 1]} : vector<4x290xf32> to vector<4x256xf32>
    %c1 = arith.constant 1 : index
    %c0_24 = arith.constant 0 : index
    %c0_25 = arith.constant 0 : index
    %52 = vector.load %arg4[%c1, %c0_24, %c0_25] : memref<9x8x4xf32, #tpu.memory_space<vmem>>, vector<1x8x4xf32>
    %53 = vector.shape_cast %52 : vector<1x8x4xf32> to vector<8x4xf32>
    %cst_26 = arith.constant dense<0.000000e+00> : vector<8x256xf32>
    %54 = tpu.matmul %53, %51, %cst_26 {dimension_numbers = #tpu.dot_dimension_numbers<[1], [0], [0], [1], [0, 0, 1, 1], [], []>} : vector<8x4xf32>, vector<4x256xf32>, vector<8x256xf32> -> vector<8x256xf32>
    %55 = arith.addf %50, %54 : vector<8x256xf32>
    %56 = vector.extract_strided_slice %46 {offsets = [0, 2], sizes = [4, 256], strides = [1, 1]} : vector<4x290xf32> to vector<4x256xf32>
    %c2 = arith.constant 2 : index
    %c0_27 = arith.constant 0 : index
    %c0_28 = arith.constant 0 : index
    %57 = vector.load %arg4[%c2, %c0_27, %c0_28] : memref<9x8x4xf32, #tpu.memory_space<vmem>>, vector<1x8x4xf32>
    %58 = vector.shape_cast %57 : vector<1x8x4xf32> to vector<8x4xf32>
    %cst_29 = arith.constant dense<0.000000e+00> : vector<8x256xf32>
    %59 = tpu.matmul %58, %56, %cst_29 {dimension_numbers = #tpu.dot_dimension_numbers<[1], [0], [0], [1], [0, 0, 1, 1], [], []>} : vector<8x4xf32>, vector<4x256xf32>, vector<8x256xf32> -> vector<8x256xf32>
    %60 = arith.addf %55, %59 : vector<8x256xf32>
    %61 = vector.extract_strided_slice %44 {offsets = [0, 16], sizes = [4, 256], strides = [1, 1]} : vector<4x290xf32> to vector<4x256xf32>
    %c3 = arith.constant 3 : index
    %c0_30 = arith.constant 0 : index
    %c0_31 = arith.constant 0 : index
    %62 = vector.load %arg4[%c3, %c0_30, %c0_31] : memref<9x8x4xf32, #tpu.memory_space<vmem>>, vector<1x8x4xf32>
    %63 = vector.shape_cast %62 : vector<1x8x4xf32> to vector<8x4xf32>
    %cst_32 = arith.constant dense<0.000000e+00> : vector<8x256xf32>
    %64 = tpu.matmul %63, %61, %cst_32 {dimension_numbers = #tpu.dot_dimension_numbers<[1], [0], [0], [1], [0, 0, 1, 1], [], []>} : vector<8x4xf32>, vector<4x256xf32>, vector<8x256xf32> -> vector<8x256xf32>
    %65 = arith.addf %60, %64 : vector<8x256xf32>
    %66 = vector.extract_strided_slice %45 {offsets = [0, 17], sizes = [4, 256], strides = [1, 1]} : vector<4x290xf32> to vector<4x256xf32>
    %c4 = arith.constant 4 : index
    %c0_33 = arith.constant 0 : index
    %c0_34 = arith.constant 0 : index
    %67 = vector.load %arg4[%c4, %c0_33, %c0_34] : memref<9x8x4xf32, #tpu.memory_space<vmem>>, vector<1x8x4xf32>
    %68 = vector.shape_cast %67 : vector<1x8x4xf32> to vector<8x4xf32>
    %cst_35 = arith.constant dense<0.000000e+00> : vector<8x256xf32>
    %69 = tpu.matmul %68, %66, %cst_35 {dimension_numbers = #tpu.dot_dimension_numbers<[1], [0], [0], [1], [0, 0, 1, 1], [], []>} : vector<8x4xf32>, vector<4x256xf32>, vector<8x256xf32> -> vector<8x256xf32>
    %70 = arith.addf %65, %69 : vector<8x256xf32>
    %71 = vector.extract_strided_slice %46 {offsets = [0, 18], sizes = [4, 256], strides = [1, 1]} : vector<4x290xf32> to vector<4x256xf32>
    %c5 = arith.constant 5 : index
    %c0_36 = arith.constant 0 : index
    %c0_37 = arith.constant 0 : index
    %72 = vector.load %arg4[%c5, %c0_36, %c0_37] : memref<9x8x4xf32, #tpu.memory_space<vmem>>, vector<1x8x4xf32>
    %73 = vector.shape_cast %72 : vector<1x8x4xf32> to vector<8x4xf32>
    %cst_38 = arith.constant dense<0.000000e+00> : vector<8x256xf32>
    %74 = tpu.matmul %73, %71, %cst_38 {dimension_numbers = #tpu.dot_dimension_numbers<[1], [0], [0], [1], [0, 0, 1, 1], [], []>} : vector<8x4xf32>, vector<4x256xf32>, vector<8x256xf32> -> vector<8x256xf32>
    %75 = arith.addf %70, %74 : vector<8x256xf32>
    %76 = vector.extract_strided_slice %44 {offsets = [0, 32], sizes = [4, 256], strides = [1, 1]} : vector<4x290xf32> to vector<4x256xf32>
    %c6 = arith.constant 6 : index
    %c0_39 = arith.constant 0 : index
    %c0_40 = arith.constant 0 : index
    %77 = vector.load %arg4[%c6, %c0_39, %c0_40] : memref<9x8x4xf32, #tpu.memory_space<vmem>>, vector<1x8x4xf32>
    %78 = vector.shape_cast %77 : vector<1x8x4xf32> to vector<8x4xf32>
    %cst_41 = arith.constant dense<0.000000e+00> : vector<8x256xf32>
    %79 = tpu.matmul %78, %76, %cst_41 {dimension_numbers = #tpu.dot_dimension_numbers<[1], [0], [0], [1], [0, 0, 1, 1], [], []>} : vector<8x4xf32>, vector<4x256xf32>, vector<8x256xf32> -> vector<8x256xf32>
    %80 = arith.addf %75, %79 : vector<8x256xf32>
    %81 = vector.extract_strided_slice %45 {offsets = [0, 33], sizes = [4, 256], strides = [1, 1]} : vector<4x290xf32> to vector<4x256xf32>
    %c7 = arith.constant 7 : index
    %c0_42 = arith.constant 0 : index
    %c0_43 = arith.constant 0 : index
    %82 = vector.load %arg4[%c7, %c0_42, %c0_43] : memref<9x8x4xf32, #tpu.memory_space<vmem>>, vector<1x8x4xf32>
    %83 = vector.shape_cast %82 : vector<1x8x4xf32> to vector<8x4xf32>
    %cst_44 = arith.constant dense<0.000000e+00> : vector<8x256xf32>
    %84 = tpu.matmul %83, %81, %cst_44 {dimension_numbers = #tpu.dot_dimension_numbers<[1], [0], [0], [1], [0, 0, 1, 1], [], []>} : vector<8x4xf32>, vector<4x256xf32>, vector<8x256xf32> -> vector<8x256xf32>
    %85 = arith.addf %80, %84 : vector<8x256xf32>
    %86 = vector.extract_strided_slice %46 {offsets = [0, 34], sizes = [4, 256], strides = [1, 1]} : vector<4x290xf32> to vector<4x256xf32>
    %c8 = arith.constant 8 : index
    %c0_45 = arith.constant 0 : index
    %c0_46 = arith.constant 0 : index
    %87 = vector.load %arg4[%c8, %c0_45, %c0_46] : memref<9x8x4xf32, #tpu.memory_space<vmem>>, vector<1x8x4xf32>
    %88 = vector.shape_cast %87 : vector<1x8x4xf32> to vector<8x4xf32>
    %cst_47 = arith.constant dense<0.000000e+00> : vector<8x256xf32>
    %89 = tpu.matmul %88, %86, %cst_47 {dimension_numbers = #tpu.dot_dimension_numbers<[1], [0], [0], [1], [0, 0, 1, 1], [], []>} : vector<8x4xf32>, vector<4x256xf32>, vector<8x256xf32> -> vector<8x256xf32>
    %90 = arith.addf %85, %89 : vector<8x256xf32>
    %91 = vector.broadcast %19 : vector<8x1xf32> to vector<8x256xf32>
    %92 = arith.mulf %90, %91 : vector<8x256xf32>
    %93 = vector.broadcast %20 : vector<8x1xf32> to vector<8x256xf32>
    %94 = arith.addf %92, %93 : vector<8x256xf32>
    %cst_48 = arith.constant 0.000000e+00 : f32
    %95 = vector.broadcast %cst_48 : f32 to vector<8x256xf32>
    %96 = arith.maximumf %94, %95 : vector<8x256xf32>
    %c15_i32_49 = arith.constant 15 : i32
    %97 = vector.broadcast %c15_i32_49 : i32 to vector<1x256xi32>
    %98 = arith.cmpi slt, %16, %97 : vector<1x256xi32>
    %cst_50 = arith.constant 0.000000e+00 : f32
    %99 = vector.shape_cast %98 : vector<1x256xi1> to vector<1x256xi1>
    %100 = vector.broadcast %99 : vector<1x256xi1> to vector<8x256xi1>
    %101 = vector.broadcast %cst_50 : f32 to vector<8x256xf32>
    %102 = arith.select %100, %96, %101 : vector<8x256xi1>, vector<8x256xf32>
    %c0_i32_51 = arith.constant 0 : i32
    %103 = vector.broadcast %c0_i32_51 : i32 to vector<1x256xi32>
    %104 = arith.cmpi sgt, %16, %103 : vector<1x256xi32>
    %cst_52 = arith.constant 0.000000e+00 : f32
    %105 = vector.shape_cast %104 : vector<1x256xi1> to vector<1x256xi1>
    %106 = vector.broadcast %105 : vector<1x256xi1> to vector<8x256xi1>
    %107 = vector.broadcast %cst_52 : f32 to vector<8x256xf32>
    %108 = arith.select %106, %96, %107 : vector<8x256xi1>, vector<8x256xf32>
    %cst_53 = arith.constant 0.000000e+00 : f32
    %109 = vector.broadcast %cst_53 : f32 to vector<8x17xf32>
    %110 = tpu.concatenate %109, %102, %109 in 1 : vector<8x17xf32>, vector<8x256xf32>, vector<8x17xf32> -> vector<8x290xf32>
    %111 = tpu.concatenate %109, %96, %109 in 1 : vector<8x17xf32>, vector<8x256xf32>, vector<8x17xf32> -> vector<8x290xf32>
    %112 = tpu.concatenate %109, %108, %109 in 1 : vector<8x17xf32>, vector<8x256xf32>, vector<8x17xf32> -> vector<8x290xf32>
    %113 = vector.extract_strided_slice %110 {offsets = [0, 0], sizes = [8, 256], strides = [1, 1]} : vector<8x290xf32> to vector<8x256xf32>
    %c0_54 = arith.constant 0 : index
    %c0_55 = arith.constant 0 : index
    %c0_56 = arith.constant 0 : index
    %114 = vector.load %arg7[%c0_54, %c0_55, %c0_56] : memref<9x8x8xf32, #tpu.memory_space<vmem>>, vector<1x8x8xf32>
    %115 = vector.shape_cast %114 : vector<1x8x8xf32> to vector<8x8xf32>
    %cst_57 = arith.constant dense<0.000000e+00> : vector<8x256xf32>
    %116 = tpu.matmul %115, %113, %cst_57 {dimension_numbers = #tpu.dot_dimension_numbers<[1], [0], [0], [1], [0, 0, 1, 1], [], []>} : vector<8x8xf32>, vector<8x256xf32>, vector<8x256xf32> -> vector<8x256xf32>
    %117 = vector.extract_strided_slice %111 {offsets = [0, 1], sizes = [8, 256], strides = [1, 1]} : vector<8x290xf32> to vector<8x256xf32>
    %c1_58 = arith.constant 1 : index
    %c0_59 = arith.constant 0 : index
    %c0_60 = arith.constant 0 : index
    %118 = vector.load %arg7[%c1_58, %c0_59, %c0_60] : memref<9x8x8xf32, #tpu.memory_space<vmem>>, vector<1x8x8xf32>
    %119 = vector.shape_cast %118 : vector<1x8x8xf32> to vector<8x8xf32>
    %cst_61 = arith.constant dense<0.000000e+00> : vector<8x256xf32>
    %120 = tpu.matmul %119, %117, %cst_61 {dimension_numbers = #tpu.dot_dimension_numbers<[1], [0], [0], [1], [0, 0, 1, 1], [], []>} : vector<8x8xf32>, vector<8x256xf32>, vector<8x256xf32> -> vector<8x256xf32>
    %121 = arith.addf %116, %120 : vector<8x256xf32>
    %122 = vector.extract_strided_slice %112 {offsets = [0, 2], sizes = [8, 256], strides = [1, 1]} : vector<8x290xf32> to vector<8x256xf32>
    %c2_62 = arith.constant 2 : index
    %c0_63 = arith.constant 0 : index
    %c0_64 = arith.constant 0 : index
    %123 = vector.load %arg7[%c2_62, %c0_63, %c0_64] : memref<9x8x8xf32, #tpu.memory_space<vmem>>, vector<1x8x8xf32>
    %124 = vector.shape_cast %123 : vector<1x8x8xf32> to vector<8x8xf32>
    %cst_65 = arith.constant dense<0.000000e+00> : vector<8x256xf32>
    %125 = tpu.matmul %124, %122, %cst_65 {dimension_numbers = #tpu.dot_dimension_numbers<[1], [0], [0], [1], [0, 0, 1, 1], [], []>} : vector<8x8xf32>, vector<8x256xf32>, vector<8x256xf32> -> vector<8x256xf32>
    %126 = arith.addf %121, %125 : vector<8x256xf32>
    %127 = vector.extract_strided_slice %110 {offsets = [0, 16], sizes = [8, 256], strides = [1, 1]} : vector<8x290xf32> to vector<8x256xf32>
    %c3_66 = arith.constant 3 : index
    %c0_67 = arith.constant 0 : index
    %c0_68 = arith.constant 0 : index
    %128 = vector.load %arg7[%c3_66, %c0_67, %c0_68] : memref<9x8x8xf32, #tpu.memory_space<vmem>>, vector<1x8x8xf32>
    %129 = vector.shape_cast %128 : vector<1x8x8xf32> to vector<8x8xf32>
    %cst_69 = arith.constant dense<0.000000e+00> : vector<8x256xf32>
    %130 = tpu.matmul %129, %127, %cst_69 {dimension_numbers = #tpu.dot_dimension_numbers<[1], [0], [0], [1], [0, 0, 1, 1], [], []>} : vector<8x8xf32>, vector<8x256xf32>, vector<8x256xf32> -> vector<8x256xf32>
    %131 = arith.addf %126, %130 : vector<8x256xf32>
    %132 = vector.extract_strided_slice %111 {offsets = [0, 17], sizes = [8, 256], strides = [1, 1]} : vector<8x290xf32> to vector<8x256xf32>
    %c4_70 = arith.constant 4 : index
    %c0_71 = arith.constant 0 : index
    %c0_72 = arith.constant 0 : index
    %133 = vector.load %arg7[%c4_70, %c0_71, %c0_72] : memref<9x8x8xf32, #tpu.memory_space<vmem>>, vector<1x8x8xf32>
    %134 = vector.shape_cast %133 : vector<1x8x8xf32> to vector<8x8xf32>
    %cst_73 = arith.constant dense<0.000000e+00> : vector<8x256xf32>
    %135 = tpu.matmul %134, %132, %cst_73 {dimension_numbers = #tpu.dot_dimension_numbers<[1], [0], [0], [1], [0, 0, 1, 1], [], []>} : vector<8x8xf32>, vector<8x256xf32>, vector<8x256xf32> -> vector<8x256xf32>
    %136 = arith.addf %131, %135 : vector<8x256xf32>
    %137 = vector.extract_strided_slice %112 {offsets = [0, 18], sizes = [8, 256], strides = [1, 1]} : vector<8x290xf32> to vector<8x256xf32>
    %c5_74 = arith.constant 5 : index
    %c0_75 = arith.constant 0 : index
    %c0_76 = arith.constant 0 : index
    %138 = vector.load %arg7[%c5_74, %c0_75, %c0_76] : memref<9x8x8xf32, #tpu.memory_space<vmem>>, vector<1x8x8xf32>
    %139 = vector.shape_cast %138 : vector<1x8x8xf32> to vector<8x8xf32>
    %cst_77 = arith.constant dense<0.000000e+00> : vector<8x256xf32>
    %140 = tpu.matmul %139, %137, %cst_77 {dimension_numbers = #tpu.dot_dimension_numbers<[1], [0], [0], [1], [0, 0, 1, 1], [], []>} : vector<8x8xf32>, vector<8x256xf32>, vector<8x256xf32> -> vector<8x256xf32>
    %141 = arith.addf %136, %140 : vector<8x256xf32>
    %142 = vector.extract_strided_slice %110 {offsets = [0, 32], sizes = [8, 256], strides = [1, 1]} : vector<8x290xf32> to vector<8x256xf32>
    %c6_78 = arith.constant 6 : index
    %c0_79 = arith.constant 0 : index
    %c0_80 = arith.constant 0 : index
    %143 = vector.load %arg7[%c6_78, %c0_79, %c0_80] : memref<9x8x8xf32, #tpu.memory_space<vmem>>, vector<1x8x8xf32>
    %144 = vector.shape_cast %143 : vector<1x8x8xf32> to vector<8x8xf32>
    %cst_81 = arith.constant dense<0.000000e+00> : vector<8x256xf32>
    %145 = tpu.matmul %144, %142, %cst_81 {dimension_numbers = #tpu.dot_dimension_numbers<[1], [0], [0], [1], [0, 0, 1, 1], [], []>} : vector<8x8xf32>, vector<8x256xf32>, vector<8x256xf32> -> vector<8x256xf32>
    %146 = arith.addf %141, %145 : vector<8x256xf32>
    %147 = vector.extract_strided_slice %111 {offsets = [0, 33], sizes = [8, 256], strides = [1, 1]} : vector<8x290xf32> to vector<8x256xf32>
    %c7_82 = arith.constant 7 : index
    %c0_83 = arith.constant 0 : index
    %c0_84 = arith.constant 0 : index
    %148 = vector.load %arg7[%c7_82, %c0_83, %c0_84] : memref<9x8x8xf32, #tpu.memory_space<vmem>>, vector<1x8x8xf32>
    %149 = vector.shape_cast %148 : vector<1x8x8xf32> to vector<8x8xf32>
    %cst_85 = arith.constant dense<0.000000e+00> : vector<8x256xf32>
    %150 = tpu.matmul %149, %147, %cst_85 {dimension_numbers = #tpu.dot_dimension_numbers<[1], [0], [0], [1], [0, 0, 1, 1], [], []>} : vector<8x8xf32>, vector<8x256xf32>, vector<8x256xf32> -> vector<8x256xf32>
    %151 = arith.addf %146, %150 : vector<8x256xf32>
    %152 = vector.extract_strided_slice %112 {offsets = [0, 34], sizes = [8, 256], strides = [1, 1]} : vector<8x290xf32> to vector<8x256xf32>
    %c8_86 = arith.constant 8 : index
    %c0_87 = arith.constant 0 : index
    %c0_88 = arith.constant 0 : index
    %153 = vector.load %arg7[%c8_86, %c0_87, %c0_88] : memref<9x8x8xf32, #tpu.memory_space<vmem>>, vector<1x8x8xf32>
    %154 = vector.shape_cast %153 : vector<1x8x8xf32> to vector<8x8xf32>
    %cst_89 = arith.constant dense<0.000000e+00> : vector<8x256xf32>
    %155 = tpu.matmul %154, %152, %cst_89 {dimension_numbers = #tpu.dot_dimension_numbers<[1], [0], [0], [1], [0, 0, 1, 1], [], []>} : vector<8x8xf32>, vector<8x256xf32>, vector<8x256xf32> -> vector<8x256xf32>
    %156 = arith.addf %151, %155 : vector<8x256xf32>
    %157 = arith.addf %156, %30 : vector<8x256xf32>
    %c0_90 = arith.constant 0 : index
    %c0_91 = arith.constant 0 : index
    %c0_92 = arith.constant 0 : index
    %158 = vector.load %arg9[%c0_90, %c0_91, %c0_92] : memref<1x8x256xf32, #tpu.memory_space<vmem>>, vector<1x8x256xf32>
    %159 = vector.shape_cast %158 : vector<1x8x256xf32> to vector<8x256xf32>
    %160 = vector.shape_cast %157 : vector<8x256xf32> to vector<1x8x256xf32>
    tpu.vector_store %arg9[%c0_90, %c0_91, %c0_92], %160 {strides = array<i32>} : memref<1x8x256xf32, #tpu.memory_space<vmem>>, vector<1x8x256xf32>,
    return
  }
  func.func @transform_0(%arg0: i32) -> (i32, i32, i32) {
    %c0_i32 = arith.constant 0 : i32
    %c0_i32_0 = arith.constant 0 : i32
    %c0_i32_1 = arith.constant 0 : i32
    return %arg0, %c0_i32, %c0_i32_0 : i32, i32, i32
  }
  func.func @transform_1(%arg0: i32) -> (i32, i32) {
    %c0_i32 = arith.constant 0 : i32
    %c0_i32_0 = arith.constant 0 : i32
    %c0_i32_1 = arith.constant 0 : i32
    return %c0_i32, %c0_i32_0 : i32, i32
  }
  func.func @transform_2(%arg0: i32) -> (i32, i32) {
    %c0_i32 = arith.constant 0 : i32
    %c0_i32_0 = arith.constant 0 : i32
    %c0_i32_1 = arith.constant 0 : i32
    return %c0_i32, %c0_i32_0 : i32, i32
  }
  func.func @transform_3(%arg0: i32) -> (i32, i32, i32) {
    %c0_i32 = arith.constant 0 : i32
    %c0_i32_0 = arith.constant 0 : i32
    %c0_i32_1 = arith.constant 0 : i32
    %c0_i32_2 = arith.constant 0 : i32
    return %c0_i32, %c0_i32_0, %c0_i32_1 : i32, i32, i32
  }
  func.func @transform_4(%arg0: i32) -> (i32, i32) {
    %c0_i32 = arith.constant 0 : i32
    %c0_i32_0 = arith.constant 0 : i32
    %c0_i32_1 = arith.constant 0 : i32
    return %c0_i32, %c0_i32_0 : i32, i32
  }
  func.func @transform_5(%arg0: i32) -> (i32, i32) {
    %c0_i32 = arith.constant 0 : i32
    %c0_i32_0 = arith.constant 0 : i32
    %c0_i32_1 = arith.constant 0 : i32
    return %c0_i32, %c0_i32_0 : i32, i32
  }
  func.func @transform_6(%arg0: i32) -> (i32, i32, i32) {
    %c0_i32 = arith.constant 0 : i32
    %c0_i32_0 = arith.constant 0 : i32
    %c0_i32_1 = arith.constant 0 : i32
    %c0_i32_2 = arith.constant 0 : i32
    return %c0_i32, %c0_i32_0, %c0_i32_1 : i32, i32, i32
  }
  func.func @transform_7(%arg0: i32) -> (i32, i32) {
    %c0_i32 = arith.constant 0 : i32
    %c0_i32_0 = arith.constant 0 : i32
    %c0_i32_1 = arith.constant 0 : i32
    return %c0_i32, %c0_i32_0 : i32, i32
  }
  func.func @transform_8(%arg0: i32) -> (i32, i32, i32) {
    %c0_i32 = arith.constant 0 : i32
    %c0_i32_0 = arith.constant 0 : i32
    %c0_i32_1 = arith.constant 0 : i32
    return %arg0, %c0_i32, %c0_i32_0 : i32, i32, i32
  }
}

</mosaic_0001>

<llo_original>
// kernel: tpu_custom_call.1
$region0: #{tpu_custom_call.1}
  #allocation0 [shape = 'u32[]', space=smem, size = 0x4, offset = 0x4, fixed_abs, tag = 'smem constant byte address 0x4 - core index']
  #allocation1 [shape = 'u32[144,128]{1,0:T(1,128)}', space=vmem, size = 0x12000, scoped, tag = 'internal scratch']
  %s0 = inlined_call_operand.vmem [shape: f32[2,4,256], index: 0, kind: input, shape index: {}]
  %s1 = inlined_call_operand.vmem [shape: f32[4,1], index: 1, kind: input, shape index: {}]
  %s2 = inlined_call_operand.vmem [shape: f32[4,1], index: 2, kind: input, shape index: {}]
  %s3 = inlined_call_operand.vmem [shape: f32[9,8,4], index: 3, kind: input, shape index: {}]
  %s4 = inlined_call_operand.vmem [shape: f32[8,1], index: 4, kind: input, shape index: {}]
  %s5 = inlined_call_operand.vmem [shape: f32[8,1], index: 5, kind: input, shape index: {}]
  %s6 = inlined_call_operand.vmem [shape: f32[9,8,8], index: 6, kind: input, shape index: {}]
  %s7 = inlined_call_operand.vmem [shape: f32[8,4], index: 7, kind: input, shape index: {}]
  %s8 = inlined_call_operand.hbm [shape: f32[2,8,256], index: 8, kind: output, shape index: {}]
  %s9 = sld [smem:[#allocation0]]
  $region65: #{tpu_custom_call.1} parent=0
    _
  %s11 = ssub.s32 1, %s9
  %s12 = scalar_select 0, %s11, %s9
  $region1: #{tpu_custom_call.1} parent=0
    #allocation2 [shape = 'u8[16384]{0}', space=vmem, size = 0x4000, scoped, tag = 'output window, operand 0']
    #allocation3 [shape = 's32[2]{0}', space=sflag, size = 0x8, scoped, tag = 'scoped memory for tpu_custom_call.1']
    %13 = vsyncpa [#allocation3], 0
    %s14 = scalar_lea.sflag [#allocation3], 1
    %15 = vsyncpa %s14, 0
    loop: start=0, step=1, limit=4
    $region2: #{tpu_custom_call.1} parent=1 // loop_pre_header
      _
    $region3: #{tpu_custom_call.1} parent=1 // loop_header
      %s17 = sphi 0, %s21
      %p18 = scmp.ge.s32.totalorder %s17, 4
      %s27 = sphi 0, %s29
      %s30 = sphi 0, %s27
      %s31 = sphi 0, %s30
      %s47 = sphi 0, %s31
      %s51 = sphi 0, %s51
      %s53 = sphi 0, %s51
      %s54 = sphi 0, %s53
      %s68 = sphi 0, %s54
      %s72 = sphi 0, %s72
      %s74 = sphi 0, %s72
      %s75 = sphi 0, %s74
      %s89 = sphi 0, %s75
      %s93 = sphi 0, %s93
      %s95 = sphi 0, %s93
      %s96 = sphi 0, %s95
      %s110 = sphi 0, %s96
      %s114 = sphi 0, %s114
      %s116 = sphi 0, %s114
      %s117 = sphi 0, %s116
      %s131 = sphi 0, %s117
      %s135 = sphi 0, %s135
      %s137 = sphi 0, %s135
      %s138 = sphi 0, %s137
      %s152 = sphi 0, %s138
      %s156 = sphi 0, %s156
      %s158 = sphi 0, %s156
      %s159 = sphi 0, %s158
      %s173 = sphi 0, %s159
      %s177 = sphi 0, %s177
      %s179 = sphi 0, %s177
      %s180 = sphi 0, %s179
      %s194 = sphi 0, %s180
      %s200 = sphi 0, %s202
      %s203 = sphi 0, %s200
      %s204 = sphi 0, %s203
      %s220 = sphi 0, %s204
    $region4: #{tpu_custom_call.1} parent=1 // loop_header_branch
      %20 = sbr.rel (%p18) target = $region8
    $region5: #{tpu_custom_call.1} parent=1 // loop_body
      %s22 = ssub.s32 %s17, 1
      %s23 = ssub.s32 %s17, 2
      %s24 = sadd.s32 %s17, 1
      %s25 = ssub.s32 %s17, %s24
      %p26 = scmp.eq.s32.totalorder %s25, 0
      %s28 = sadd.s32 %s27, 1
      %s29 = scalar_select %p26, %s27, %s28
      %p32 = pneg %p26
      %p33 = scmp.eq.s32.totalorder %s17, 1
      %p34 = por %p32, %p33
      %p35 = scmp.ne.s32.totalorder %s27, %s30
      %p36 = scmp.eq.s32.totalorder %s17, 0
      %p37 = por %p35, %p36
      %p38 = scmp.ne.s32.totalorder %s27, %s30
      %p39 = scmp.eq.s32.totalorder %s22, 1
      %p40 = por %p38, %p39
      %p41 = scmp.ne.s32.totalorder %s30, %s31
      %p42 = scmp.eq.s32.totalorder %s22, 0
      %p43 = por %p41, %p42
      %p44 = scmp.ne.s32.totalorder %s30, %s31
      %p45 = scmp.eq.s32.totalorder %s23, 1
      %p46 = por %p44, %p45
      %p48 = scmp.ne.s32.totalorder %s31, %s47
      %p49 = scmp.eq.s32.totalorder %s23, 0
      %p50 = por %p48, %p49
      %s52 = sadd.s32 %s51, 1
      %p55 = scmp.eq.s32.totalorder %s17, 1
      %p56 = scmp.ne.s32.totalorder %s51, %s53
      %p57 = scmp.eq.s32.totalorder %s17, 0
      %p58 = por %p56, %p57
      %p59 = scmp.ne.s32.totalorder %s51, %s53
      %p60 = scmp.eq.s32.totalorder %s22, 1
      %p61 = por %p59, %p60
      %p62 = scmp.ne.s32.totalorder %s53, %s54
      %p63 = scmp.eq.s32.totalorder %s22, 0
      %p64 = por %p62, %p63
      %p65 = scmp.ne.s32.totalorder %s53, %s54
      %p66 = scmp.eq.s32.totalorder %s23, 1
      %p67 = por %p65, %p66
      %p69 = scmp.ne.s32.totalorder %s54, %s68
      %p70 = scmp.eq.s32.totalorder %s23, 0
      %p71 = por %p69, %p70
      %s73 = sadd.s32 %s72, 1
      %p76 = scmp.eq.s32.totalorder %s17, 1
      %p77 = scmp.ne.s32.totalorder %s72, %s74
      %p78 = scmp.eq.s32.totalorder %s17, 0
      %p79 = por %p77, %p78
      %p80 = scmp.ne.s32.totalorder %s72, %s74
      %p81 = scmp.eq.s32.totalorder %s22, 1
      %p82 = por %p80, %p81
      %p83 = scmp.ne.s32.totalorder %s74, %s75
      %p84 = scmp.eq.s32.totalorder %s22, 0
      %p85 = por %p83, %p84
      %p86 = scmp.ne.s32.totalorder %s74, %s75
      %p87 = scmp.eq.s32.totalorder %s23, 1
      %p88 = por %p86, %p87
      %p90 = scmp.ne.s32.totalorder %s75, %s89
      %p91 = scmp.eq.s32.totalorder %s23, 0
      %p92 = por %p90, %p91
      %s94 = sadd.s32 %s93, 1
      %p97 = scmp.eq.s32.totalorder %s17, 1
      %p98 = scmp.ne.s32.totalorder %s93, %s95
      %p99 = scmp.eq.s32.totalorder %s17, 0
      %p100 = por %p98, %p99
      %p101 = scmp.ne.s32.totalorder %s93, %s95
      %p102 = scmp.eq.s32.totalorder %s22, 1
      %p103 = por %p101, %p102
      %p104 = scmp.ne.s32.totalorder %s95, %s96
      %p105 = scmp.eq.s32.totalorder %s22, 0
      %p106 = por %p104, %p105
      %p107 = scmp.ne.s32.totalorder %s95, %s96
      %p108 = scmp.eq.s32.totalorder %s23, 1
      %p109 = por %p107, %p108
      %p111 = scmp.ne.s32.totalorder %s96, %s110
      %p112 = scmp.eq.s32.totalorder %s23, 0
      %p113 = por %p111, %p112
      %s115 = sadd.s32 %s114, 1
      %p118 = scmp.eq.s32.totalorder %s17, 1
      %p119 = scmp.ne.s32.totalorder %s114, %s116
      %p120 = scmp.eq.s32.totalorder %s17, 0
      %p121 = por %p119, %p120
      %p122 = scmp.ne.s32.totalorder %s114, %s116
      %p123 = scmp.eq.s32.totalorder %s22, 1
      %p124 = por %p122, %p123
      %p125 = scmp.ne.s32.totalorder %s116, %s117
      %p126 = scmp.eq.s32.totalorder %s22, 0
      %p127 = por %p125, %p126
      %p128 = scmp.ne.s32.totalorder %s116, %s117
      %p129 = scmp.eq.s32.totalorder %s23, 1
      %p130 = por %p128, %p129
      %p132 = scmp.ne.s32.totalorder %s117, %s131
      %p133 = scmp.eq.s32.totalorder %s23, 0
      %p134 = por %p132, %p133
      %s136 = sadd.s32 %s135, 1
      %p139 = scmp.eq.s32.totalorder %s17, 1
      %p140 = scmp.ne.s32.totalorder %s135, %s137
      %p141 = scmp.eq.s32.totalorder %s17, 0
      %p142 = por %p140, %p141
      %p143 = scmp.ne.s32.totalorder %s135, %s137
      %p144 = scmp.eq.s32.totalorder %s22, 1
      %p145 = por %p143, %p144
      %p146 = scmp.ne.s32.totalorder %s137, %s138
      %p147 = scmp.eq.s32.totalorder %s22, 0
      %p148 = por %p146, %p147
      %p149 = scmp.ne.s32.totalorder %s137, %s138
      %p150 = scmp.eq.s32.totalorder %s23, 1
      %p151 = por %p149, %p150
      %p153 = scmp.ne.s32.totalorder %s138, %s152
      %p154 = scmp.eq.s32.totalorder %s23, 0
      %p155 = por %p153, %p154
      %s157 = sadd.s32 %s156, 1
      %p160 = scmp.eq.s32.totalorder %s17, 1
      %p161 = scmp.ne.s32.totalorder %s156, %s158
      %p162 = scmp.eq.s32.totalorder %s17, 0
      %p163 = por %p161, %p162
      %p164 = scmp.ne.s32.totalorder %s156, %s158
      %p165 = scmp.eq.s32.totalorder %s22, 1
      %p166 = por %p164, %p165
      %p167 = scmp.ne.s32.totalorder %s158, %s159
      %p168 = scmp.eq.s32.totalorder %s22, 0
      %p169 = por %p167, %p168
      %p170 = scmp.ne.s32.totalorder %s158, %s159
      %p171 = scmp.eq.s32.totalorder %s23, 1
      %p172 = por %p170, %p171
      %p174 = scmp.ne.s32.totalorder %s159, %s173
      %p175 = scmp.eq.s32.totalorder %s23, 0
      %p176 = por %p174, %p175
      %s178 = sadd.s32 %s177, 1
      %p181 = scmp.eq.s32.totalorder %s17, 1
      %p182 = scmp.ne.s32.totalorder %s177, %s179
      %p183 = scmp.eq.s32.totalorder %s17, 0
      %p184 = por %p182, %p183
      %p185 = scmp.ne.s32.totalorder %s177, %s179
      %p186 = scmp.eq.s32.totalorder %s22, 1
      %p187 = por %p185, %p186
      %p188 = scmp.ne.s32.totalorder %s179, %s180
      %p189 = scmp.eq.s32.totalorder %s22, 0
      %p190 = por %p188, %p189
      %p191 = scmp.ne.s32.totalorder %s179, %s180
      %p192 = scmp.eq.s32.totalorder %s23, 1
      %p193 = por %p191, %p192
      %p195 = scmp.ne.s32.totalorder %s180, %s194
      %p196 = scmp.eq.s32.totalorder %s23, 0
      %p197 = por %p195, %p196
      %s198 = ssub.s32 %s17, %s24
      %p199 = scmp.eq.s32.totalorder %s198, 0
      %s201 = sadd.s32 %s200, 1
      %s202 = scalar_select %p199, %s200, %s201
      %p205 = pneg %p199
      %p206 = scmp.eq.s32.totalorder %s17, 1
      %p207 = por %p205, %p206
      %p208 = scmp.ne.s32.totalorder %s200, %s203
      %p209 = scmp.eq.s32.totalorder %s17, 0
      %p210 = por %p208, %p209
      %p211 = scmp.ne.s32.totalorder %s200, %s203
      %p212 = scmp.eq.s32.totalorder %s22, 1
      %p213 = por %p211, %p212
      %p214 = scmp.ne.s32.totalorder %s203, %s204
      %p215 = scmp.eq.s32.totalorder %s22, 0
      %p216 = por %p214, %p215
      %p217 = scmp.ne.s32.totalorder %s203, %s204
      %p218 = scmp.eq.s32.totalorder %s23, 1
      %p219 = por %p217, %p218
      %p221 = scmp.ne.s32.totalorder %s204, %s220
      %p222 = scmp.eq.s32.totalorder %s23, 0
      %p223 = por %p221, %p222
      %p224 = scmp.le.s32.totalorder 1, %s17
      %p225 = scmp.lt.s32.totalorder %s17, 3
      %p226 = pnand %p224, %p225
      %p227 = pneg %p226
      // Predicated region
      $region9: #{tpu_custom_call.1} parent=5 // pred_check
        _
      $region10: #{tpu_custom_call.1} parent=5 // pred_check_branch
        %229 = sbr.rel (%p226) target = $region12
      $region11: #{tpu_custom_call.1} parent=5 // pred_region
        %s230 = ssub.s32 %s17, 1
        // Predicated region
        $region13: #{tpu_custom_call.1} parent=11 // pred_check
          %p231 = pneg %p64
        $region14: #{tpu_custom_call.1} parent=11 // pred_check_branch
          %233 = sbr.rel (%p231) target = $region16
        $region15: #{tpu_custom_call.1} parent=11 // pred_region
          _
        $region16: #{tpu_custom_call.1} parent=11 // pred_fallthru
          _
        // Predicated region
        $region17: #{tpu_custom_call.1} parent=11 // pred_check
          %p234 = pneg %p85
        $region18: #{tpu_custom_call.1} parent=11 // pred_check_branch
          %236 = sbr.rel (%p234) target = $region20
        $region19: #{tpu_custom_call.1} parent=11 // pred_region
          _
        $region20: #{tpu_custom_call.1} parent=11 // pred_fallthru
          _
        // Predicated region
        $region21: #{tpu_custom_call.1} parent=11 // pred_check
          %p237 = pneg %p106
        $region22: #{tpu_custom_call.1} parent=11 // pred_check_branch
          %239 = sbr.rel (%p237) target = $region24
        $region23: #{tpu_custom_call.1} parent=11 // pred_region
          _
        $region24: #{tpu_custom_call.1} parent=11 // pred_fallthru
          _
        // Predicated region
        $region25: #{tpu_custom_call.1} parent=11 // pred_check
          %p240 = pneg %p127
        $region26: #{tpu_custom_call.1} parent=11 // pred_check_branch
          %242 = sbr.rel (%p240) target = $region28
        $region27: #{tpu_custom_call.1} parent=11 // pred_region
          _
        $region28: #{tpu_custom_call.1} parent=11 // pred_fallthru
          _
        // Predicated region
        $region29: #{tpu_custom_call.1} parent=11 // pred_check
          %p243 = pneg %p148
        $region30: #{tpu_custom_call.1} parent=11 // pred_check_branch
          %245 = sbr.rel (%p243) target = $region32
        $region31: #{tpu_custom_call.1} parent=11 // pred_region
          _
        $region32: #{tpu_custom_call.1} parent=11 // pred_fallthru
          _
        // Predicated region
        $region33: #{tpu_custom_call.1} parent=11 // pred_check
          %p246 = pneg %p169
        $region34: #{tpu_custom_call.1} parent=11 // pred_check_branch
          %248 = sbr.rel (%p246) target = $region36
        $region35: #{tpu_custom_call.1} parent=11 // pred_region
          _
        $region36: #{tpu_custom_call.1} parent=11 // pred_fallthru
          _
        // Predicated region
        $region37: #{tpu_custom_call.1} parent=11 // pred_check
          %p249 = pneg %p190
        $region38: #{tpu_custom_call.1} parent=11 // pred_check_branch
          %251 = sbr.rel (%p249) target = $region40
        $region39: #{tpu_custom_call.1} parent=11 // pred_region
          _
        $region40: #{tpu_custom_call.1} parent=11 // pred_fallthru
          _
      $region12: #{tpu_custom_call.1} parent=5 // pred_fallthru
        _
      %p252 = scmp.lt.s32.totalorder %s17, 2
      // Predicated region
      $region41: #{tpu_custom_call.1} parent=5 // pred_check
        %p253 = pneg %p252
      $region42: #{tpu_custom_call.1} parent=5 // pred_check_branch
        %255 = sbr.rel (%p253) target = $region44
      $region43: #{tpu_custom_call.1} parent=5 // pred_region
        // Predicated region
        $region45: #{tpu_custom_call.1} parent=43 // pred_check
          %p256 = pneg %p37
        $region46: #{tpu_custom_call.1} parent=43 // pred_check_branch
          %258 = sbr.rel (%p256) target = $region48
        $region47: #{tpu_custom_call.1} parent=43 // pred_region
          %p259 = scmp.lt.s32.totalorder %s17, 1
          %s260 = scalar_select %p259, %s17, 1
          %s261 = smul.addr %s260, 2
          %s262 = smul.addr %s261, 4
          %s263 = scalar_lea.vmem %s0, %s262
        $region48: #{tpu_custom_call.1} parent=43 // pred_fallthru
          _
      $region44: #{tpu_custom_call.1} parent=5 // pred_fallthru
        _
      %p264 = scmp.le.s32.totalorder 1, %s17
      %p265 = scmp.lt.s32.totalorder %s17, 3
      %p266 = pnand %p264, %p265
      %p267 = pneg %p266
      // Predicated region
      $region49: #{tpu_custom_call.1} parent=5 // pred_check
        _
      $region50: #{tpu_custom_call.1} parent=5 // pred_check_branch
        %269 = sbr.rel (%p266) target = $region52
      $region51: #{tpu_custom_call.1} parent=5 // pred_region
        %s270 = ssub.s32 %s17, 1
        %p271 = scmp.lt.s32.totalorder %s22, 1
        %s272 = scalar_select %p271, %s22, 1
        %s273 = smul.addr %s272, 2
        %s274 = smul.addr %s273, 4
        %s275 = scalar_lea.vmem %s0, %s274
        %p276 = pneg %p43
        %p277 = pneg %p40
        %p278 = pneg %p64
        %p279 = pneg %p61
        %p280 = pneg %p85
        %p281 = pneg %p82
        %p282 = pneg %p106
        %p283 = pneg %p103
        %p284 = pneg %p127
        %p285 = pneg %p124
        %p286 = pneg %p148
        %p287 = pneg %p145
        %p288 = pneg %p169
        %p289 = pneg %p166
        %p290 = pneg %p190
        %p291 = pneg %p187
        %p292 = pneg %p216
        %p293 = pneg %p213
        %s294 = sand.u32 %s203, 1
        %s295 = scalar_lea.sflag [#allocation3], %s294
        %s296 = sand.u32 %s203, 1
        %s297 = smul.addr %s296, 16
        %s298 = scalar_lea.vmem [#allocation2], %s297
        %p299 = scmp.lt.s32.totalorder %s22, 1
        %s300 = scalar_select %p299, %s22, 1
        %s301 = smul.addr %s300, 2
        %s302 = smul.addr %s301, 4
        %s303 = scalar_lea.vmem %s0, %s302
        %v304 = vlaneseq
        %v305 = vand.u32 %v304, 127
        %v306 = vadd.s32 %v305, 128
        %vm307 = vcmp.lt.s32.totalorder %v305, 0
        %v308 = vsub.s32 0, %v305
        %v309 = vsel %vm307, %v308, %v305
        %v310 = vshrl.u32 %v309, 4
        %v311 = vand.u32 %v309, 15
        %v312 = vsub.s32 0, %v311
        %v313 = vsel %vm307, %v312, %v311
        %vm314 = vcmp.lt.s32.totalorder %v306, 0
        %v315 = vsub.s32 0, %v306
        %v316 = vsel %vm314, %v315, %v306
        %v317 = vshrl.u32 %v316, 4
        %v318 = vand.u32 %v316, 15
        %v319 = vsub.s32 0, %v318
        %v320 = vsel %vm314, %v319, %v318
        %vm321 = vcmp.ne.s32.totalorder %v313, 0
        %vm322 = vcmp.ne.s32.totalorder %v320, 0
        %vm323 = vcmp.lt.s32.totalorder %v313, 0
        %vm324 = vcmp.lt.s32.totalorder %v320, 0
        %vm325 = vmand %vm323, %vm321
        %vm326 = vmand %vm324, %vm322
        %v327 = vadd.s32 %v313, 16
        %v328 = vadd.s32 %v320, 16
        %v329 = vsel %vm325, %v327, %v313
        %v330 = vsel %vm326, %v328, %v320
        %v331 = vld [vmem:[%s1] sm:$0xf]
        %v332 = vld [vmem:[%s2] sm:$0xf]
        %v333 = vld [vmem:[%s4] sm:$0xff]
        %v334 = vld [vmem:[%s5] sm:$0xff]
        %v335 = vld [vmem:[%s7] sm:$0xff]
        %v336 = vld [vmem:[%s303] sm:$0xff]
        %338 = vset.pattern.permute.xlu0 0
        %339 = vperm.xlu0 %338, %v331
        %v340 = vpop.permute.xlu0 %339
        %v342 = vunpack.c.l.s4 839922192
        %v343 = vunpack.c.0.s8 %v342
        %v344 = vlaneseq
        %v345 = vshrl.u32 %v344, 7
        %v346 = vsub.s32 %v343, %v345
        %v347 = vrot.slane %v340, %v346
        %v349 = vmul.f32 %v336, %v347
        %351 = vset.pattern.permute.xlu0 0
        %352 = vperm.xlu0 %351, %v332
        %v353 = vpop.permute.xlu0 %352
        %v355 = vunpack.c.l.s4 839922192
        %v356 = vunpack.c.0.s8 %v355
        %v357 = vlaneseq
        %v358 = vshrl.u32 %v357, 7
        %v359 = vsub.s32 %v356, %v358
        %v360 = vrot.slane %v353, %v359
        %v362 = vadd.f32 %v349, %v360
        %v363 = vmax.f32 %v362, 0.0
        %v365 = vcombine.high %v363, %v363
        %vm366 = vcmask 31744
        %v368 = vsel %vm366, %v335, 0
        %vm370 = vcmask 1043456
        %v371 = vsel %vm370, %v363, 0
        %v373 = vsel %vm370, %v365, 0
        %375 = vmatprep.subr.mxu0 %v373
        %376 = vmatpush1.msra.mxu0 %v371
        %377 = vmatprep.subr.mxu0 0.0
        %378 = vmatpush1.msra.mxu0 0.0
        %379 = vmatprep.subr.mxu0 0.0
        %380 = vmatpush1.msra.mxu0 0.0
        %381 = vmatprep.subr.mxu0 0.0
        %382 = vmatpush1.msra.mxu0 0.0
        %383 = vmatprep.subr.mxu0 0.0
        %384 = vmatpush1.msra.mxu0 0.0
        %385 = vmatprep.subr.mxu0 0.0
        %386 = vmatpush1.msra.mxu0 0.0
        %387 = vmatprep.subr.mxu0 0.0
        %388 = vmatpush1.msra.mxu0 0.0
        %389 = vmatprep.subr.mxu0 0.0
        %390 = vmatpush1.msra.mxu0 0.0
        %391 = vmatprep.subr.mxu0 0.0
        %392 = vmatpush1.msra.mxu0 0.0
        %393 = vmatprep.subr.mxu0 0.0
        %394 = vmatpush1.msra.mxu0 0.0
        %395 = vmatprep.subr.mxu0 0.0
        %396 = vmatpush1.msra.mxu0 0.0
        %397 = vmatprep.subr.mxu0 0.0
        %398 = vmatpush1.msra.mxu0 0.0
        %399 = vmatprep.subr.mxu0 0.0
        %400 = vmatpush1.msra.mxu0 0.0
        %401 = vmatprep.subr.mxu0 0.0
        %402 = vmatpush1.msra.mxu0 0.0
        %403 = vmatprep.subr.mxu0 0.0
        %404 = vmatpush1.msra.mxu0 0.0
        %405 = vmatprep.subr.mxu0 0.0
        %406 = vmatpush1.msra.mxu0 0.0
        %407 = vmatprep.subr.mxu0 0.0
        %408 = vmatpush1.msra.mxu0 0.0
        %409 = vmatprep.subr.mxu0 0.0
        %410 = vmatpush1.msra.mxu0 0.0
        %411 = vmatprep.subr.mxu0 0.0
        %412 = vmatpush1.msra.mxu0 0.0
        %413 = vmatprep.subr.mxu0 0.0
        %414 = vmatpush1.msra.mxu0 0.0
        %415 = vmatprep.subr.mxu0 0.0
        %416 = vmatpush1.msra.mxu0 0.0
        %417 = vmatprep.subr.mxu0 0.0
        %418 = vmatpush1.msra.mxu0 0.0
        %419 = vmatprep.subr.mxu0 0.0
        %420 = vmatpush1.msra.mxu0 0.0
        %421 = vmatprep.subr.mxu0 0.0
        %422 = vmatpush1.msra.mxu0 0.0
        %423 = vmatprep.subr.mxu0 0.0
        %424 = vmatpush1.msra.mxu0 0.0
        %425 = vmatprep.subr.mxu0 0.0
        %426 = vmatpush1.msra.mxu0 0.0
        %427 = vmatprep.subr.mxu0 0.0
        %428 = vmatpush1.msra.mxu0 0.0
        %429 = vmatprep.subr.mxu0 0.0
        %430 = vmatpush1.msra.mxu0 0.0
        %431 = vmatprep.subr.mxu0 0.0
        %432 = vmatpush1.msra.mxu0 0.0
        %433 = vmatprep.subr.mxu0 0.0
        %434 = vmatpush1.msra.mxu0 0.0
        %435 = vmatprep.subr.mxu0 0.0
        %436 = vmatpush1.msra.mxu0 0.0
        %437 = vmatprep.subr.mxu0 0.0
        %438 = vmatpush1.msra.mxu0 0.0
        %439 = vmatprep.mubr.f32.mxu0 0.0
        %440 = vmatmul.mubr.f32.gmra.mrb[0].mxu0 %v368
        %v441 = vpop.f32.mrb[0].mxu0
        %v442 = vadd.f32 0.0, %v441
        %v443 = vpop.f32.mrb[0].mxu0
        %v444 = vadd.f32 0.0, %v443
        %445 = vdwg.mxu0
        %vm446 = vcmp.lt.s32.totalorder %v329, 15
        %vm447 = vcmp.lt.s32.totalorder %v330, 15
        %v448 = vsel %vm446, 1, 0
        %v449 = vsel %vm447, 1, 0
        %vm450 = vcmp.eq.s32.totalorder %v448, 1
        %vm451 = vcmp.eq.s32.totalorder %v449, 1
        %v453 = vsel %vm450, %v363, 0.0
        %v454 = vsel %vm451, %v365, 0.0
        %vm455 = vcmp.gt.s32.totalorder %v329, 0
        %vm456 = vcmp.gt.s32.totalorder %v330, 0
        %v457 = vsel %vm455, 1, 0
        %v458 = vsel %vm456, 1, 0
        %vm459 = vcmp.eq.s32.totalorder %v457, 1
        %vm460 = vcmp.eq.s32.totalorder %v458, 1
        %v461 = vsel %vm459, %v363, 0.0
        %v462 = vsel %vm460, %v365, 0.0
        %465 = vrot.lane.b32.xlu0 %v453, 17
        %v466 = vpop.permute.xlu0 %465
        %467 = vrot.lane.b32.xlu0 %v454, 17
        %v468 = vpop.permute.xlu0 %467
        %vm469 = vcmask 138240
        %v470 = vsel %vm469, %v466, %v468
        %v473 = vsel %vm469, 0.0, %v466
        %v474 = vsel %vm469, %v468, 0.0
        %475 = vrot.lane.b32.xlu0 %v363, 17
        %v476 = vpop.permute.xlu0 %475
        %477 = vrot.lane.b32.xlu0 %v365, 17
        %v478 = vpop.permute.xlu0 %477
        %v479 = vsel %vm469, %v476, %v478
        %v482 = vsel %vm469, 0.0, %v476
        %v483 = vsel %vm469, %v478, 0.0
        %486 = vrot.lane.b32.xlu0 %v461, 17
        %v487 = vpop.permute.xlu0 %486
        %488 = vrot.lane.b32.xlu0 %v462, 17
        %v489 = vpop.permute.xlu0 %488
        %v490 = vsel %vm469, %v487, %v489
        %v493 = vsel %vm469, 0.0, %v487
        %v494 = vsel %vm469, %v489, 0.0
        %v495 = vld [vmem:[%s3] sm:$0xff]
        %s496 = scalar_lea.vmem %s3, 8
        %v497 = vld [vmem:[%s496] sm:$0xff]
        %500 = vrot.lane.b32.xlu0 %v482, 127
        %v501 = vpop.permute.xlu0 %500
        %502 = vrot.lane.b32.xlu0 %v479, 127
        %v503 = vpop.permute.xlu0 %502
        %504 = vrot.lane.b32.xlu0 %v483, 127
        %v505 = vpop.permute.xlu0 %504
        %vm506 = vcmask 1039360
        %v507 = vsel %vm506, %v501, %v503
        %v508 = vsel %vm506, %v503, %v505
        %v510 = vsel %vm366, %v497, 0
        %v512 = vsel %vm370, %v507, 0
        %v514 = vsel %vm370, %v508, 0
        %516 = vmatprep.subr.mxu0 %v514
        %517 = vmatpush1.msra.mxu0 %v512
        %518 = vmatprep.subr.mxu0 0.0
        %519 = vmatpush1.msra.mxu0 0.0
        %520 = vmatprep.subr.mxu0 0.0
        %521 = vmatpush1.msra.mxu0 0.0
        %522 = vmatprep.subr.mxu0 0.0
        %523 = vmatpush1.msra.mxu0 0.0
        %524 = vmatprep.subr.mxu0 0.0
        %525 = vmatpush1.msra.mxu0 0.0
        %526 = vmatprep.subr.mxu0 0.0
        %527 = vmatpush1.msra.mxu0 0.0
        %528 = vmatprep.subr.mxu0 0.0
        %529 = vmatpush1.msra.mxu0 0.0
        %530 = vmatprep.subr.mxu0 0.0
        %531 = vmatpush1.msra.mxu0 0.0
        %532 = vmatprep.subr.mxu0 0.0
        %533 = vmatpush1.msra.mxu0 0.0
        %534 = vmatprep.subr.mxu0 0.0
        %535 = vmatpush1.msra.mxu0 0.0
        %536 = vmatprep.subr.mxu0 0.0
        %537 = vmatpush1.msra.mxu0 0.0
        %538 = vmatprep.subr.mxu0 0.0
        %539 = vmatpush1.msra.mxu0 0.0
        %540 = vmatprep.subr.mxu0 0.0
        %541 = vmatpush1.msra.mxu0 0.0
        %542 = vmatprep.subr.mxu0 0.0
        %543 = vmatpush1.msra.mxu0 0.0
        %544 = vmatprep.subr.mxu0 0.0
        %545 = vmatpush1.msra.mxu0 0.0
        %546 = vmatprep.subr.mxu0 0.0
        %547 = vmatpush1.msra.mxu0 0.0
        %548 = vmatprep.subr.mxu0 0.0
        %549 = vmatpush1.msra.mxu0 0.0
        %550 = vmatprep.subr.mxu0 0.0
        %551 = vmatpush1.msra.mxu0 0.0
        %552 = vmatprep.subr.mxu0 0.0
        %553 = vmatpush1.msra.mxu0 0.0
        %554 = vmatprep.subr.mxu0 0.0
        %555 = vmatpush1.msra.mxu0 0.0
        %556 = vmatprep.subr.mxu0 0.0
        %557 = vmatpush1.msra.mxu0 0.0
        %558 = vmatprep.subr.mxu0 0.0
        %559 = vmatpush1.msra.mxu0 0.0
        %560 = vmatprep.subr.mxu0 0.0
        %561 = vmatpush1.msra.mxu0 0.0
        %562 = vmatprep.subr.mxu0 0.0
        %563 = vmatpush1.msra.mxu0 0.0
        %564 = vmatprep.subr.mxu0 0.0
        %565 = vmatpush1.msra.mxu0 0.0
        %566 = vmatprep.subr.mxu0 0.0
        %567 = vmatpush1.msra.mxu0 0.0
        %568 = vmatprep.subr.mxu0 0.0
        %569 = vmatpush1.msra.mxu0 0.0
        %570 = vmatprep.subr.mxu0 0.0
        %571 = vmatpush1.msra.mxu0 0.0
        %572 = vmatprep.subr.mxu0 0.0
        %573 = vmatpush1.msra.mxu0 0.0
        %574 = vmatprep.subr.mxu0 0.0
        %575 = vmatpush1.msra.mxu0 0.0
        %576 = vmatprep.subr.mxu0 0.0
        %577 = vmatpush1.msra.mxu0 0.0
        %578 = vmatprep.subr.mxu0 0.0
        %579 = vmatpush1.msra.mxu0 0.0
        %580 = vmatprep.mubr.f32.mxu0 0.0
        %581 = vmatmul.mubr.f32.gmra.mrb[0].mxu0 %v510
        %v582 = vpop.f32.mrb[0].mxu0
        %v583 = vadd.f32 0.0, %v582
        %v584 = vpop.f32.mrb[0].mxu0
        %v585 = vadd.f32 0.0, %v584
        %586 = vdwg.mxu0
        %v588 = vsel %vm366, %v495, 0
        %v591 = vsel %vm370, %v473, 0
        %v593 = vsel %vm370, %v470, 0
        %595 = vmatprep.subr.mxu0 %v593
        %596 = vmatpush1.msra.mxu0 %v591
        %597 = vmatprep.subr.mxu0 0.0
        %598 = vmatpush1.msra.mxu0 0.0
        %599 = vmatprep.subr.mxu0 0.0
        %600 = vmatpush1.msra.mxu0 0.0
        %601 = vmatprep.subr.mxu0 0.0
        %602 = vmatpush1.msra.mxu0 0.0
        %603 = vmatprep.subr.mxu0 0.0
        %604 = vmatpush1.msra.mxu0 0.0
        %605 = vmatprep.subr.mxu0 0.0
        %606 = vmatpush1.msra.mxu0 0.0
        %607 = vmatprep.subr.mxu0 0.0
        %608 = vmatpush1.msra.mxu0 0.0
        %609 = vmatprep.subr.mxu0 0.0
        %610 = vmatpush1.msra.mxu0 0.0
        %611 = vmatprep.subr.mxu0 0.0
        %612 = vmatpush1.msra.mxu0 0.0
        %613 = vmatprep.subr.mxu0 0.0
        %614 = vmatpush1.msra.mxu0 0.0
        %615 = vmatprep.subr.mxu0 0.0
        %616 = vmatpush1.msra.mxu0 0.0
        %617 = vmatprep.subr.mxu0 0.0
        %618 = vmatpush1.msra.mxu0 0.0
        %619 = vmatprep.subr.mxu0 0.0
        %620 = vmatpush1.msra.mxu0 0.0
        %621 = vmatprep.subr.mxu0 0.0
        %622 = vmatpush1.msra.mxu0 0.0
        %623 = vmatprep.subr.mxu0 0.0
        %624 = vmatpush1.msra.mxu0 0.0
        %625 = vmatprep.subr.mxu0 0.0
        %626 = vmatpush1.msra.mxu0 0.0
        %627 = vmatprep.subr.mxu0 0.0
        %628 = vmatpush1.msra.mxu0 0.0
        %629 = vmatprep.subr.mxu0 0.0
        %630 = vmatpush1.msra.mxu0 0.0
        %631 = vmatprep.subr.mxu0 0.0
        %632 = vmatpush1.msra.mxu0 0.0
        %633 = vmatprep.subr.mxu0 0.0
        %634 = vmatpush1.msra.mxu0 0.0
        %635 = vmatprep.subr.mxu0 0.0
        %636 = vmatpush1.msra.mxu0 0.0
        %637 = vmatprep.subr.mxu0 0.0
        %638 = vmatpush1.msra.mxu0 0.0
        %639 = vmatprep.subr.mxu0 0.0
        %640 = vmatpush1.msra.mxu0 0.0
        %641 = vmatprep.subr.mxu0 0.0
        %642 = vmatpush1.msra.mxu0 0.0
        %643 = vmatprep.subr.mxu0 0.0
        %644 = vmatpush1.msra.mxu0 0.0
        %645 = vmatprep.subr.mxu0 0.0
        %646 = vmatpush1.msra.mxu0 0.0
        %647 = vmatprep.subr.mxu0 0.0
        %648 = vmatpush1.msra.mxu0 0.0
        %649 = vmatprep.subr.mxu0 0.0
        %650 = vmatpush1.msra.mxu0 0.0
        %651 = vmatprep.subr.mxu0 0.0
        %652 = vmatpush1.msra.mxu0 0.0
        %653 = vmatprep.subr.mxu0 0.0
        %654 = vmatpush1.msra.mxu0 0.0
        %655 = vmatprep.subr.mxu0 0.0
        %656 = vmatpush1.msra.mxu0 0.0
        %657 = vmatprep.subr.mxu0 0.0
        %658 = vmatpush1.msra.mxu0 0.0
        %659 = vmatprep.mubr.f32.mxu0 0.0
        %660 = vmatmul.mubr.f32.gmra.mrb[0].mxu0 %v588
        %v661 = vpop.f32.mrb[0].mxu0
        %v662 = vadd.f32 %v583, %v661
        %v663 = vpop.f32.mrb[0].mxu0
        %v664 = vadd.f32 %v585, %v663
        %665 = vdwg.mxu0
        %s666 = scalar_lea.vmem %s3, 16
        %v667 = vld [vmem:[%s666] sm:$0xff]
        %670 = vrot.lane.b32.xlu0 %v493, 126
        %v671 = vpop.permute.xlu0 %670
        %672 = vrot.lane.b32.xlu0 %v490, 126
        %v673 = vpop.permute.xlu0 %672
        %674 = vrot.lane.b32.xlu0 %v494, 126
        %v675 = vpop.permute.xlu0 %674
        %vm676 = vcmask 1031168
        %v677 = vsel %vm676, %v671, %v673
        %v678 = vsel %vm676, %v673, %v675
        %v680 = vsel %vm366, %v667, 0
        %v682 = vsel %vm370, %v677, 0
        %v684 = vsel %vm370, %v678, 0
        %686 = vmatprep.subr.mxu0 %v684
        %687 = vmatpush1.msra.mxu0 %v682
        %688 = vmatprep.subr.mxu0 0.0
        %689 = vmatpush1.msra.mxu0 0.0
        %690 = vmatprep.subr.mxu0 0.0
        %691 = vmatpush1.msra.mxu0 0.0
        %692 = vmatprep.subr.mxu0 0.0
        %693 = vmatpush1.msra.mxu0 0.0
        %694 = vmatprep.subr.mxu0 0.0
        %695 = vmatpush1.msra.mxu0 0.0
        %696 = vmatprep.subr.mxu0 0.0
        %697 = vmatpush1.msra.mxu0 0.0
        %698 = vmatprep.subr.mxu0 0.0
        %699 = vmatpush1.msra.mxu0 0.0
        %700 = vmatprep.subr.mxu0 0.0
        %701 = vmatpush1.msra.mxu0 0.0
        %702 = vmatprep.subr.mxu0 0.0
        %703 = vmatpush1.msra.mxu0 0.0
        %704 = vmatprep.subr.mxu0 0.0
        %705 = vmatpush1.msra.mxu0 0.0
        %706 = vmatprep.subr.mxu0 0.0
        %707 = vmatpush1.msra.mxu0 0.0
        %708 = vmatprep.subr.mxu0 0.0
        %709 = vmatpush1.msra.mxu0 0.0
        %710 = vmatprep.subr.mxu0 0.0
        %711 = vmatpush1.msra.mxu0 0.0
        %712 = vmatprep.subr.mxu0 0.0
        %713 = vmatpush1.msra.mxu0 0.0
        %714 = vmatprep.subr.mxu0 0.0
        %715 = vmatpush1.msra.mxu0 0.0
        %716 = vmatprep.subr.mxu0 0.0
        %717 = vmatpush1.msra.mxu0 0.0
        %718 = vmatprep.subr.mxu0 0.0
        %719 = vmatpush1.msra.mxu0 0.0
        %720 = vmatprep.subr.mxu0 0.0
        %721 = vmatpush1.msra.mxu0 0.0
        %722 = vmatprep.subr.mxu0 0.0
        %723 = vmatpush1.msra.mxu0 0.0
        %724 = vmatprep.subr.mxu0 0.0
        %725 = vmatpush1.msra.mxu0 0.0
        %726 = vmatprep.subr.mxu0 0.0
        %727 = vmatpush1.msra.mxu0 0.0
        %728 = vmatprep.subr.mxu0 0.0
        %729 = vmatpush1.msra.mxu0 0.0
        %730 = vmatprep.subr.mxu0 0.0
        %731 = vmatpush1.msra.mxu0 0.0
        %732 = vmatprep.subr.mxu0 0.0
        %733 = vmatpush1.msra.mxu0 0.0
        %734 = vmatprep.subr.mxu0 0.0
        %735 = vmatpush1.msra.mxu0 0.0
        %736 = vmatprep.subr.mxu0 0.0
        %737 = vmatpush1.msra.mxu0 0.0
        %738 = vmatprep.subr.mxu0 0.0
        %739 = vmatpush1.msra.mxu0 0.0
        %740 = vmatprep.subr.mxu0 0.0
        %741 = vmatpush1.msra.mxu0 0.0
        %742 = vmatprep.subr.mxu0 0.0
        %743 = vmatpush1.msra.mxu0 0.0
        %744 = vmatprep.subr.mxu0 0.0
        %745 = vmatpush1.msra.mxu0 0.0
        %746 = vmatprep.subr.mxu0 0.0
        %747 = vmatpush1.msra.mxu0 0.0
        %748 = vmatprep.subr.mxu0 0.0
        %749 = vmatpush1.msra.mxu0 0.0
        %750 = vmatprep.mubr.f32.mxu0 0.0
        %751 = vmatmul.mubr.f32.gmra.mrb[0].mxu0 %v680
        %v752 = vpop.f32.mrb[0].mxu0
        %v753 = vadd.f32 0.0, %v752
        %v754 = vpop.f32.mrb[0].mxu0
        %v755 = vadd.f32 0.0, %v754
        %756 = vdwg.mxu0
        %v757 = vadd.f32 %v662, %v753
        %v758 = vadd.f32 %v664, %v755
        %s759 = scalar_lea.vmem %s3, 24
        %v760 = vld [vmem:[%s759] sm:$0xff]
        %762 = vrot.lane.b32.xlu0 %v473, 112
        %v763 = vpop.permute.xlu0 %762
        %764 = vrot.lane.b32.xlu0 %v470, 112
        %v765 = vpop.permute.xlu0 %764
        %766 = vrot.lane.b32.xlu0 %v474, 112
        %v767 = vpop.permute.xlu0 %766
        %vm768 = vcmask 916480
        %v769 = vsel %vm768, %v763, %v765
        %v770 = vsel %vm768, %v765, %v767
        %v772 = vsel %vm366, %v760, 0
        %v774 = vsel %vm370, %v769, 0
        %v776 = vsel %vm370, %v770, 0
        %778 = vmatprep.subr.mxu0 %v776
        %779 = vmatpush1.msra.mxu0 %v774
        %780 = vmatprep.subr.mxu0 0.0
        %781 = vmatpush1.msra.mxu0 0.0
        %782 = vmatprep.subr.mxu0 0.0
        %783 = vmatpush1.msra.mxu0 0.0
        %784 = vmatprep.subr.mxu0 0.0
        %785 = vmatpush1.msra.mxu0 0.0
        %786 = vmatprep.subr.mxu0 0.0
        %787 = vmatpush1.msra.mxu0 0.0
        %788 = vmatprep.subr.mxu0 0.0
        %789 = vmatpush1.msra.mxu0 0.0
        %790 = vmatprep.subr.mxu0 0.0
        %791 = vmatpush1.msra.mxu0 0.0
        %792 = vmatprep.subr.mxu0 0.0
        %793 = vmatpush1.msra.mxu0 0.0
        %794 = vmatprep.subr.mxu0 0.0
        %795 = vmatpush1.msra.mxu0 0.0
        %796 = vmatprep.subr.mxu0 0.0
        %797 = vmatpush1.msra.mxu0 0.0
        %798 = vmatprep.subr.mxu0 0.0
        %799 = vmatpush1.msra.mxu0 0.0
        %800 = vmatprep.subr.mxu0 0.0
        %801 = vmatpush1.msra.mxu0 0.0
        %802 = vmatprep.subr.mxu0 0.0
        %803 = vmatpush1.msra.mxu0 0.0
        %804 = vmatprep.subr.mxu0 0.0
        %805 = vmatpush1.msra.mxu0 0.0
        %806 = vmatprep.subr.mxu0 0.0
        %807 = vmatpush1.msra.mxu0 0.0
        %808 = vmatprep.subr.mxu0 0.0
        %809 = vmatpush1.msra.mxu0 0.0
        %810 = vmatprep.subr.mxu0 0.0
        %811 = vmatpush1.msra.mxu0 0.0
        %812 = vmatprep.subr.mxu0 0.0
        %813 = vmatpush1.msra.mxu0 0.0
        %814 = vmatprep.subr.mxu0 0.0
        %815 = vmatpush1.msra.mxu0 0.0
        %816 = vmatprep.subr.mxu0 0.0
        %817 = vmatpush1.msra.mxu0 0.0
        %818 = vmatprep.subr.mxu0 0.0
        %819 = vmatpush1.msra.mxu0 0.0
        %820 = vmatprep.subr.mxu0 0.0
        %821 = vmatpush1.msra.mxu0 0.0
        %822 = vmatprep.subr.mxu0 0.0
        %823 = vmatpush1.msra.mxu0 0.0
        %824 = vmatprep.subr.mxu0 0.0
        %825 = vmatpush1.msra.mxu0 0.0
        %826 = vmatprep.subr.mxu0 0.0
        %827 = vmatpush1.msra.mxu0 0.0
        %828 = vmatprep.subr.mxu0 0.0
        %829 = vmatpush1.msra.mxu0 0.0
        %830 = vmatprep.subr.mxu0 0.0
        %831 = vmatpush1.msra.mxu0 0.0
        %832 = vmatprep.subr.mxu0 0.0
        %833 = vmatpush1.msra.mxu0 0.0
        %834 = vmatprep.subr.mxu0 0.0
        %835 = vmatpush1.msra.mxu0 0.0
        %836 = vmatprep.subr.mxu0 0.0
        %837 = vmatpush1.msra.mxu0 0.0
        %838 = vmatprep.subr.mxu0 0.0
        %839 = vmatpush1.msra.mxu0 0.0
        %840 = vmatprep.subr.mxu0 0.0
        %841 = vmatpush1.msra.mxu0 0.0
        %842 = vmatprep.mubr.f32.mxu0 0.0
        %843 = vmatmul.mubr.f32.gmra.mrb[0].mxu0 %v772
        %v844 = vpop.f32.mrb[0].mxu0
        %v845 = vadd.f32 0.0, %v844
        %v846 = vpop.f32.mrb[0].mxu0
        %v847 = vadd.f32 0.0, %v846
        %848 = vdwg.mxu0
        %v849 = vadd.f32 %v757, %v845
        %v850 = vadd.f32 %v758, %v847
        %s851 = scalar_lea.vmem %s3, 32
        %v852 = vld [vmem:[%s851] sm:$0xff]
        %853 = vrot.lane.b32.xlu0 %v482, 111
        %v854 = vpop.permute.xlu0 %853
        %855 = vrot.lane.b32.xlu0 %v479, 111
        %v856 = vpop.permute.xlu0 %855
        %857 = vrot.lane.b32.xlu0 %v483, 111
        %v858 = vpop.permute.xlu0 %857
        %vm859 = vcmask 908288
        %v860 = vsel %vm859, %v854, %v856
        %v861 = vsel %vm859, %v856, %v858
        %v863 = vsel %vm366, %v852, 0
        %v865 = vsel %vm370, %v860, 0
        %v867 = vsel %vm370, %v861, 0
        %869 = vmatprep.subr.mxu0 %v867
        %870 = vmatpush1.msra.mxu0 %v865
        %871 = vmatprep.subr.mxu0 0.0
        %872 = vmatpush1.msra.mxu0 0.0
        %873 = vmatprep.subr.mxu0 0.0
        %874 = vmatpush1.msra.mxu0 0.0
        %875 = vmatprep.subr.mxu0 0.0
        %876 = vmatpush1.msra.mxu0 0.0
        %877 = vmatprep.subr.mxu0 0.0
        %878 = vmatpush1.msra.mxu0 0.0
        %879 = vmatprep.subr.mxu0 0.0
        %880 = vmatpush1.msra.mxu0 0.0
        %881 = vmatprep.subr.mxu0 0.0
        %882 = vmatpush1.msra.mxu0 0.0
        %883 = vmatprep.subr.mxu0 0.0
        %884 = vmatpush1.msra.mxu0 0.0
        %885 = vmatprep.subr.mxu0 0.0
        %886 = vmatpush1.msra.mxu0 0.0
        %887 = vmatprep.subr.mxu0 0.0
        %888 = vmatpush1.msra.mxu0 0.0
        %889 = vmatprep.subr.mxu0 0.0
        %890 = vmatpush1.msra.mxu0 0.0
        %891 = vmatprep.subr.mxu0 0.0
        %892 = vmatpush1.msra.mxu0 0.0
        %893 = vmatprep.subr.mxu0 0.0
        %894 = vmatpush1.msra.mxu0 0.0
        %895 = vmatprep.subr.mxu0 0.0
        %896 = vmatpush1.msra.mxu0 0.0
        %897 = vmatprep.subr.mxu0 0.0
        %898 = vmatpush1.msra.mxu0 0.0
        %899 = vmatprep.subr.mxu0 0.0
        %900 = vmatpush1.msra.mxu0 0.0
        %901 = vmatprep.subr.mxu0 0.0
        %902 = vmatpush1.msra.mxu0 0.0
        %903 = vmatprep.subr.mxu0 0.0
        %904 = vmatpush1.msra.mxu0 0.0
        %905 = vmatprep.subr.mxu0 0.0
        %906 = vmatpush1.msra.mxu0 0.0
        %907 = vmatprep.subr.mxu0 0.0
        %908 = vmatpush1.msra.mxu0 0.0
        %909 = vmatprep.subr.mxu0 0.0
        %910 = vmatpush1.msra.mxu0 0.0
        %911 = vmatprep.subr.mxu0 0.0
        %912 = vmatpush1.msra.mxu0 0.0
        %913 = vmatprep.subr.mxu0 0.0
        %914 = vmatpush1.msra.mxu0 0.0
        %915 = vmatprep.subr.mxu0 0.0
        %916 = vmatpush1.msra.mxu0 0.0
        %917 = vmatprep.subr.mxu0 0.0
        %918 = vmatpush1.msra.mxu0 0.0
        %919 = vmatprep.subr.mxu0 0.0
        %920 = vmatpush1.msra.mxu0 0.0
        %921 = vmatprep.subr.mxu0 0.0
        %922 = vmatpush1.msra.mxu0 0.0
        %923 = vmatprep.subr.mxu0 0.0
        %924 = vmatpush1.msra.mxu0 0.0
        %925 = vmatprep.subr.mxu0 0.0
        %926 = vmatpush1.msra.mxu0 0.0
        %927 = vmatprep.subr.mxu0 0.0
        %928 = vmatpush1.msra.mxu0 0.0
        %929 = vmatprep.subr.mxu0 0.0
        %930 = vmatpush1.msra.mxu0 0.0
        %931 = vmatprep.subr.mxu0 0.0
        %932 = vmatpush1.msra.mxu0 0.0
        %933 = vmatprep.mubr.f32.mxu0 0.0
        %934 = vmatmul.mubr.f32.gmra.mrb[0].mxu0 %v863
        %v935 = vpop.f32.mrb[0].mxu0
        %v936 = vadd.f32 0.0, %v935
        %v937 = vpop.f32.mrb[0].mxu0
        %v938 = vadd.f32 0.0, %v937
        %939 = vdwg.mxu0
        %v940 = vadd.f32 %v849, %v936
        %v941 = vadd.f32 %v850, %v938
        %s942 = scalar_lea.vmem %s3, 40
        %v943 = vld [vmem:[%s942] sm:$0xff]
        %944 = vrot.lane.b32.xlu0 %v493, 110
        %v945 = vpop.permute.xlu0 %944
        %946 = vrot.lane.b32.xlu0 %v490, 110
        %v947 = vpop.permute.xlu0 %946
        %948 = vrot.lane.b32.xlu0 %v494, 110
        %v949 = vpop.permute.xlu0 %948
        %vm950 = vcmask 900096
        %v951 = vsel %vm950, %v945, %v947
        %v952 = vsel %vm950, %v947, %v949
        %v954 = vsel %vm366, %v943, 0
        %v956 = vsel %vm370, %v951, 0
        %v958 = vsel %vm370, %v952, 0
        %960 = vmatprep.subr.mxu0 %v958
        %961 = vmatpush1.msra.mxu0 %v956
        %962 = vmatprep.subr.mxu0 0.0
        %963 = vmatpush1.msra.mxu0 0.0
        %964 = vmatprep.subr.mxu0 0.0
        %965 = vmatpush1.msra.mxu0 0.0
        %966 = vmatprep.subr.mxu0 0.0
        %967 = vmatpush1.msra.mxu0 0.0
        %968 = vmatprep.subr.mxu0 0.0
        %969 = vmatpush1.msra.mxu0 0.0
        %970 = vmatprep.subr.mxu0 0.0
        %971 = vmatpush1.msra.mxu0 0.0
        %972 = vmatprep.subr.mxu0 0.0
        %973 = vmatpush1.msra.mxu0 0.0
        %974 = vmatprep.subr.mxu0 0.0
        %975 = vmatpush1.msra.mxu0 0.0
        %976 = vmatprep.subr.mxu0 0.0
        %977 = vmatpush1.msra.mxu0 0.0
        %978 = vmatprep.subr.mxu0 0.0
        %979 = vmatpush1.msra.mxu0 0.0
        %980 = vmatprep.subr.mxu0 0.0
        %981 = vmatpush1.msra.mxu0 0.0
        %982 = vmatprep.subr.mxu0 0.0
        %983 = vmatpush1.msra.mxu0 0.0
        %984 = vmatprep.subr.mxu0 0.0
        %985 = vmatpush1.msra.mxu0 0.0
        %986 = vmatprep.subr.mxu0 0.0
        %987 = vmatpush1.msra.mxu0 0.0
        %988 = vmatprep.subr.mxu0 0.0
        %989 = vmatpush1.msra.mxu0 0.0
        %990 = vmatprep.subr.mxu0 0.0
        %991 = vmatpush1.msra.mxu0 0.0
        %992 = vmatprep.subr.mxu0 0.0
        %993 = vmatpush1.msra.mxu0 0.0
        %994 = vmatprep.subr.mxu0 0.0
        %995 = vmatpush1.msra.mxu0 0.0
        %996 = vmatprep.subr.mxu0 0.0
        %997 = vmatpush1.msra.mxu0 0.0
        %998 = vmatprep.subr.mxu0 0.0
        %999 = vmatpush1.msra.mxu0 0.0
        %1000 = vmatprep.subr.mxu0 0.0
        %1001 = vmatpush1.msra.mxu0 0.0
        %1002 = vmatprep.subr.mxu0 0.0
        %1003 = vmatpush1.msra.mxu0 0.0
        %1004 = vmatprep.subr.mxu0 0.0
        %1005 = vmatpush1.msra.mxu0 0.0
        %1006 = vmatprep.subr.mxu0 0.0
        %1007 = vmatpush1.msra.mxu0 0.0
        %1008 = vmatprep.subr.mxu0 0.0
        %1009 = vmatpush1.msra.mxu0 0.0
        %1010 = vmatprep.subr.mxu0 0.0
        %1011 = vmatpush1.msra.mxu0 0.0
        %1012 = vmatprep.subr.mxu0 0.0
        %1013 = vmatpush1.msra.mxu0 0.0
        %1014 = vmatprep.subr.mxu0 0.0
        %1015 = vmatpush1.msra.mxu0 0.0
        %1016 = vmatprep.subr.mxu0 0.0
        %1017 = vmatpush1.msra.mxu0 0.0
        %1018 = vmatprep.subr.mxu0 0.0
        %1019 = vmatpush1.msra.mxu0 0.0
        %1020 = vmatprep.subr.mxu0 0.0
        %1021 = vmatpush1.msra.mxu0 0.0
        %1022 = vmatprep.subr.mxu0 0.0
        %1023 = vmatpush1.msra.mxu0 0.0
        %1024 = vmatprep.mubr.f32.mxu0 0.0
        %1025 = vmatmul.mubr.f32.gmra.mrb[0].mxu0 %v954
        %v1026 = vpop.f32.mrb[0].mxu0
        %v1027 = vadd.f32 0.0, %v1026
        %v1028 = vpop.f32.mrb[0].mxu0
        %v1029 = vadd.f32 0.0, %v1028
        %1030 = vdwg.mxu0
        %v1031 = vadd.f32 %v940, %v1027
        %v1032 = vadd.f32 %v941, %v1029
        %s1033 = scalar_lea.vmem %s3, 48
        %v1034 = vld [vmem:[%s1033] sm:$0xff]
        %1035 = vrot.lane.b32.xlu0 %v473, 96
        %v1036 = vpop.permute.xlu0 %1035
        %1037 = vrot.lane.b32.xlu0 %v470, 96
        %v1038 = vpop.permute.xlu0 %1037
        %1039 = vrot.lane.b32.xlu0 %v474, 96
        %v1040 = vpop.permute.xlu0 %1039
        %vm1041 = vcmask 785408
        %v1042 = vsel %vm1041, %v1036, %v1038
        %v1043 = vsel %vm1041, %v1038, %v1040
        %v1045 = vsel %vm366, %v1034, 0
        %v1047 = vsel %vm370, %v1042, 0
        %v1049 = vsel %vm370, %v1043, 0
        %1051 = vmatprep.subr.mxu0 %v1049
        %1052 = vmatpush1.msra.mxu0 %v1047
        %1053 = vmatprep.subr.mxu0 0.0
        %1054 = vmatpush1.msra.mxu0 0.0
        %1055 = vmatprep.subr.mxu0 0.0
        %1056 = vmatpush1.msra.mxu0 0.0
        %1057 = vmatprep.subr.mxu0 0.0
        %1058 = vmatpush1.msra.mxu0 0.0
        %1059 = vmatprep.subr.mxu0 0.0
        %1060 = vmatpush1.msra.mxu0 0.0
        %1061 = vmatprep.subr.mxu0 0.0
        %1062 = vmatpush1.msra.mxu0 0.0
        %1063 = vmatprep.subr.mxu0 0.0
        %1064 = vmatpush1.msra.mxu0 0.0
        %1065 = vmatprep.subr.mxu0 0.0
        %1066 = vmatpush1.msra.mxu0 0.0
        %1067 = vmatprep.subr.mxu0 0.0
        %1068 = vmatpush1.msra.mxu0 0.0
        %1069 = vmatprep.subr.mxu0 0.0
        %1070 = vmatpush1.msra.mxu0 0.0
        %1071 = vmatprep.subr.mxu0 0.0
        %1072 = vmatpush1.msra.mxu0 0.0
        %1073 = vmatprep.subr.mxu0 0.0
        %1074 = vmatpush1.msra.mxu0 0.0
        %1075 = vmatprep.subr.mxu0 0.0
        %1076 = vmatpush1.msra.mxu0 0.0
        %1077 = vmatprep.subr.mxu0 0.0
        %1078 = vmatpush1.msra.mxu0 0.0
        %1079 = vmatprep.subr.mxu0 0.0
        %1080 = vmatpush1.msra.mxu0 0.0
        %1081 = vmatprep.subr.mxu0 0.0
        %1082 = vmatpush1.msra.mxu0 0.0
        %1083 = vmatprep.subr.mxu0 0.0
        %1084 = vmatpush1.msra.mxu0 0.0
        %1085 = vmatprep.subr.mxu0 0.0
        %1086 = vmatpush1.msra.mxu0 0.0
        %1087 = vmatprep.subr.mxu0 0.0
        %1088 = vmatpush1.msra.mxu0 0.0
        %1089 = vmatprep.subr.mxu0 0.0
        %1090 = vmatpush1.msra.mxu0 0.0
        %1091 = vmatprep.subr.mxu0 0.0
        %1092 = vmatpush1.msra.mxu0 0.0
        %1093 = vmatprep.subr.mxu0 0.0
        %1094 = vmatpush1.msra.mxu0 0.0
        %1095 = vmatprep.subr.mxu0 0.0
        %1096 = vmatpush1.msra.mxu0 0.0
        %1097 = vmatprep.subr.mxu0 0.0
        %1098 = vmatpush1.msra.mxu0 0.0
        %1099 = vmatprep.subr.mxu0 0.0
        %1100 = vmatpush1.msra.mxu0 0.0
        %1101 = vmatprep.subr.mxu0 0.0
        %1102 = vmatpush1.msra.mxu0 0.0
        %1103 = vmatprep.subr.mxu0 0.0
        %1104 = vmatpush1.msra.mxu0 0.0
        %1105 = vmatprep.subr.mxu0 0.0
        %1106 = vmatpush1.msra.mxu0 0.0
        %1107 = vmatprep.subr.mxu0 0.0
        %1108 = vmatpush1.msra.mxu0 0.0
        %1109 = vmatprep.subr.mxu0 0.0
        %1110 = vmatpush1.msra.mxu0 0.0
        %1111 = vmatprep.subr.mxu0 0.0
        %1112 = vmatpush1.msra.mxu0 0.0
        %1113 = vmatprep.subr.mxu0 0.0
        %1114 = vmatpush1.msra.mxu0 0.0
        %1115 = vmatprep.mubr.f32.mxu0 0.0
        %1116 = vmatmul.mubr.f32.gmra.mrb[0].mxu0 %v1045
        %v1117 = vpop.f32.mrb[0].mxu0
        %v1118 = vadd.f32 0.0, %v1117
        %v1119 = vpop.f32.mrb[0].mxu0
        %v1120 = vadd.f32 0.0, %v1119
        %1121 = vdwg.mxu0
        %v1122 = vadd.f32 %v1031, %v1118
        %v1123 = vadd.f32 %v1032, %v1120
        %s1124 = scalar_lea.vmem %s3, 56
        %v1125 = vld [vmem:[%s1124] sm:$0xff]
        %1126 = vrot.lane.b32.xlu0 %v482, 95
        %v1127 = vpop.permute.xlu0 %1126
        %1128 = vrot.lane.b32.xlu0 %v479, 95
        %v1129 = vpop.permute.xlu0 %1128
        %1130 = vrot.lane.b32.xlu0 %v483, 95
        %v1131 = vpop.permute.xlu0 %1130
        %vm1132 = vcmask 777216
        %v1133 = vsel %vm1132, %v1127, %v1129
        %v1134 = vsel %vm1132, %v1129, %v1131
        %v1136 = vsel %vm366, %v1125, 0
        %v1138 = vsel %vm370, %v1133, 0
        %v1140 = vsel %vm370, %v1134, 0
        %1142 = vmatprep.subr.mxu0 %v1140
        %1143 = vmatpush1.msra.mxu0 %v1138
        %1144 = vmatprep.subr.mxu0 0.0
        %1145 = vmatpush1.msra.mxu0 0.0
        %1146 = vmatprep.subr.mxu0 0.0
        %1147 = vmatpush1.msra.mxu0 0.0
        %1148 = vmatprep.subr.mxu0 0.0
        %1149 = vmatpush1.msra.mxu0 0.0
        %1150 = vmatprep.subr.mxu0 0.0
        %1151 = vmatpush1.msra.mxu0 0.0
        %1152 = vmatprep.subr.mxu0 0.0
        %1153 = vmatpush1.msra.mxu0 0.0
        %1154 = vmatprep.subr.mxu0 0.0
        %1155 = vmatpush1.msra.mxu0 0.0
        %1156 = vmatprep.subr.mxu0 0.0
        %1157 = vmatpush1.msra.mxu0 0.0
        %1158 = vmatprep.subr.mxu0 0.0
        %1159 = vmatpush1.msra.mxu0 0.0
        %1160 = vmatprep.subr.mxu0 0.0
        %1161 = vmatpush1.msra.mxu0 0.0
        %1162 = vmatprep.subr.mxu0 0.0
        %1163 = vmatpush1.msra.mxu0 0.0
        %1164 = vmatprep.subr.mxu0 0.0
        %1165 = vmatpush1.msra.mxu0 0.0
        %1166 = vmatprep.subr.mxu0 0.0
        %1167 = vmatpush1.msra.mxu0 0.0
        %1168 = vmatprep.subr.mxu0 0.0
        %1169 = vmatpush1.msra.mxu0 0.0
        %1170 = vmatprep.subr.mxu0 0.0
        %1171 = vmatpush1.msra.mxu0 0.0
        %1172 = vmatprep.subr.mxu0 0.0
        %1173 = vmatpush1.msra.mxu0 0.0
        %1174 = vmatprep.subr.mxu0 0.0
        %1175 = vmatpush1.msra.mxu0 0.0
        %1176 = vmatprep.subr.mxu0 0.0
        %1177 = vmatpush1.msra.mxu0 0.0
        %1178 = vmatprep.subr.mxu0 0.0
        %1179 = vmatpush1.msra.mxu0 0.0
        %1180 = vmatprep.subr.mxu0 0.0
        %1181 = vmatpush1.msra.mxu0 0.0
        %1182 = vmatprep.subr.mxu0 0.0
        %1183 = vmatpush1.msra.mxu0 0.0
        %1184 = vmatprep.subr.mxu0 0.0
        %1185 = vmatpush1.msra.mxu0 0.0
        %1186 = vmatprep.subr.mxu0 0.0
        %1187 = vmatpush1.msra.mxu0 0.0
        %1188 = vmatprep.subr.mxu0 0.0
        %1189 = vmatpush1.msra.mxu0 0.0
        %1190 = vmatprep.subr.mxu0 0.0
        %1191 = vmatpush1.msra.mxu0 0.0
        %1192 = vmatprep.subr.mxu0 0.0
        %1193 = vmatpush1.msra.mxu0 0.0
        %1194 = vmatprep.subr.mxu0 0.0
        %1195 = vmatpush1.msra.mxu0 0.0
        %1196 = vmatprep.subr.mxu0 0.0
        %1197 = vmatpush1.msra.mxu0 0.0
        %1198 = vmatprep.subr.mxu0 0.0
        %1199 = vmatpush1.msra.mxu0 0.0
        %1200 = vmatprep.subr.mxu0 0.0
        %1201 = vmatpush1.msra.mxu0 0.0
        %1202 = vmatprep.subr.mxu0 0.0
        %1203 = vmatpush1.msra.mxu0 0.0
        %1204 = vmatprep.subr.mxu0 0.0
        %1205 = vmatpush1.msra.mxu0 0.0
        %1206 = vmatprep.mubr.f32.mxu0 0.0
        %1207 = vmatmul.mubr.f32.gmra.mrb[0].mxu0 %v1136
        %v1208 = vpop.f32.mrb[0].mxu0
        %v1209 = vadd.f32 0.0, %v1208
        %v1210 = vpop.f32.mrb[0].mxu0
        %v1211 = vadd.f32 0.0, %v1210
        %1212 = vdwg.mxu0
        %v1213 = vadd.f32 %v1122, %v1209
        %v1214 = vadd.f32 %v1123, %v1211
        %s1215 = scalar_lea.vmem %s3, 64
        %v1216 = vld [vmem:[%s1215] sm:$0xff]
        %1217 = vrot.lane.b32.xlu0 %v493, 94
        %v1218 = vpop.permute.xlu0 %1217
        %1219 = vrot.lane.b32.xlu0 %v490, 94
        %v1220 = vpop.permute.xlu0 %1219
        %1221 = vrot.lane.b32.xlu0 %v494, 94
        %v1222 = vpop.permute.xlu0 %1221
        %vm1223 = vcmask 769024
        %v1224 = vsel %vm1223, %v1218, %v1220
        %v1225 = vsel %vm1223, %v1220, %v1222
        %v1227 = vsel %vm366, %v1216, 0
        %v1229 = vsel %vm370, %v1224, 0
        %v1231 = vsel %vm370, %v1225, 0
        %1233 = vmatprep.subr.mxu0 %v1231
        %1234 = vmatpush1.msra.mxu0 %v1229
        %1235 = vmatprep.subr.mxu0 0.0
        %1236 = vmatpush1.msra.mxu0 0.0
        %1237 = vmatprep.subr.mxu0 0.0
        %1238 = vmatpush1.msra.mxu0 0.0
        %1239 = vmatprep.subr.mxu0 0.0
        %1240 = vmatpush1.msra.mxu0 0.0
        %1241 = vmatprep.subr.mxu0 0.0
        %1242 = vmatpush1.msra.mxu0 0.0
        %1243 = vmatprep.subr.mxu0 0.0
        %1244 = vmatpush1.msra.mxu0 0.0
        %1245 = vmatprep.subr.mxu0 0.0
        %1246 = vmatpush1.msra.mxu0 0.0
        %1247 = vmatprep.subr.mxu0 0.0
        %1248 = vmatpush1.msra.mxu0 0.0
        %1249 = vmatprep.subr.mxu0 0.0
        %1250 = vmatpush1.msra.mxu0 0.0
        %1251 = vmatprep.subr.mxu0 0.0
        %1252 = vmatpush1.msra.mxu0 0.0
        %1253 = vmatprep.subr.mxu0 0.0
        %1254 = vmatpush1.msra.mxu0 0.0
        %1255 = vmatprep.subr.mxu0 0.0
        %1256 = vmatpush1.msra.mxu0 0.0
        %1257 = vmatprep.subr.mxu0 0.0
        %1258 = vmatpush1.msra.mxu0 0.0
        %1259 = vmatprep.subr.mxu0 0.0
        %1260 = vmatpush1.msra.mxu0 0.0
        %1261 = vmatprep.subr.mxu0 0.0
        %1262 = vmatpush1.msra.mxu0 0.0
        %1263 = vmatprep.subr.mxu0 0.0
        %1264 = vmatpush1.msra.mxu0 0.0
        %1265 = vmatprep.subr.mxu0 0.0
        %1266 = vmatpush1.msra.mxu0 0.0
        %1267 = vmatprep.subr.mxu0 0.0
        %1268 = vmatpush1.msra.mxu0 0.0
        %1269 = vmatprep.subr.mxu0 0.0
        %1270 = vmatpush1.msra.mxu0 0.0
        %1271 = vmatprep.subr.mxu0 0.0
        %1272 = vmatpush1.msra.mxu0 0.0
        %1273 = vmatprep.subr.mxu0 0.0
        %1274 = vmatpush1.msra.mxu0 0.0
        %1275 = vmatprep.subr.mxu0 0.0
        %1276 = vmatpush1.msra.mxu0 0.0
        %1277 = vmatprep.subr.mxu0 0.0
        %1278 = vmatpush1.msra.mxu0 0.0
        %1279 = vmatprep.subr.mxu0 0.0
        %1280 = vmatpush1.msra.mxu0 0.0
        %1281 = vmatprep.subr.mxu0 0.0
        %1282 = vmatpush1.msra.mxu0 0.0
        %1283 = vmatprep.subr.mxu0 0.0
        %1284 = vmatpush1.msra.mxu0 0.0
        %1285 = vmatprep.subr.mxu0 0.0
        %1286 = vmatpush1.msra.mxu0 0.0
        %1287 = vmatprep.subr.mxu0 0.0
        %1288 = vmatpush1.msra.mxu0 0.0
        %1289 = vmatprep.subr.mxu0 0.0
        %1290 = vmatpush1.msra.mxu0 0.0
        %1291 = vmatprep.subr.mxu0 0.0
        %1292 = vmatpush1.msra.mxu0 0.0
        %1293 = vmatprep.subr.mxu0 0.0
        %1294 = vmatpush1.msra.mxu0 0.0
        %1295 = vmatprep.subr.mxu0 0.0
        %1296 = vmatpush1.msra.mxu0 0.0
        %1297 = vmatprep.mubr.f32.mxu0 0.0
        %1298 = vmatmul.mubr.f32.gmra.mrb[0].mxu0 %v1227
        %v1299 = vpop.f32.mrb[0].mxu0
        %v1300 = vadd.f32 0.0, %v1299
        %v1301 = vpop.f32.mrb[0].mxu0
        %v1302 = vadd.f32 0.0, %v1301
        %1303 = vdwg.mxu0
        %v1304 = vadd.f32 %v1213, %v1300
        %v1305 = vadd.f32 %v1214, %v1302
        %1307 = vset.pattern.permute.xlu0 0
        %1308 = vperm.xlu0 %1307, %v333
        %v1309 = vpop.permute.xlu0 %1308
        %v1311 = vmul.f32 %v1304, %v1309
        %v1312 = vmul.f32 %v1305, %v1309
        %1314 = vset.pattern.permute.xlu0 0
        %1315 = vperm.xlu0 %1314, %v334
        %v1316 = vpop.permute.xlu0 %1315
        %v1318 = vadd.f32 %v1311, %v1316
        %v1319 = vadd.f32 %v1312, %v1316
        %v1320 = vmax.f32 %v1318, 0.0
        %v1321 = vmax.f32 %v1319, 0.0
        %v1322 = vsel %vm450, %v1320, 0.0
        %v1323 = vsel %vm451, %v1321, 0.0
        %v1324 = vsel %vm459, %v1320, 0.0
        %v1325 = vsel %vm460, %v1321, 0.0
        %1328 = vrot.lane.b32.xlu0 %v1322, 17
        %v1329 = vpop.permute.xlu0 %1328
        %1330 = vrot.lane.b32.xlu0 %v1323, 17
        %v1331 = vpop.permute.xlu0 %1330
        %v1332 = vsel %vm469, %v1329, %v1331
        %v1336 = vsel %vm469, 0.0, %v1329
        %v1337 = vsel %vm469, %v1331, 0.0
        %1340 = vrot.lane.b32.xlu0 %v1320, 17
        %v1341 = vpop.permute.xlu0 %1340
        %1342 = vrot.lane.b32.xlu0 %v1321, 17
        %v1343 = vpop.permute.xlu0 %1342
        %v1344 = vsel %vm469, %v1341, %v1343
        %v1347 = vsel %vm469, 0.0, %v1341
        %v1348 = vsel %vm469, %v1343, 0.0
        %1351 = vrot.lane.b32.xlu0 %v1324, 17
        %v1352 = vpop.permute.xlu0 %1351
        %1353 = vrot.lane.b32.xlu0 %v1325, 17
        %v1354 = vpop.permute.xlu0 %1353
        %v1355 = vsel %vm469, %v1352, %v1354
        %v1358 = vsel %vm469, 0.0, %v1352
        %v1359 = vsel %vm469, %v1354, 0.0
        %v1360 = vld [vmem:[%s6] sm:$0xff]
        %s1361 = scalar_lea.vmem %s6, 8
        %v1362 = vld [vmem:[%s1361] sm:$0xff]
        %1365 = vrot.lane.b32.xlu0 %v1347, 127
        %v1366 = vpop.permute.xlu0 %1365
        %1367 = vrot.lane.b32.xlu0 %v1344, 127
        %v1368 = vpop.permute.xlu0 %1367
        %1369 = vrot.lane.b32.xlu0 %v1348, 127
        %v1370 = vpop.permute.xlu0 %1369
        %v1371 = vsel %vm506, %v1366, %v1368
        %v1372 = vsel %vm506, %v1368, %v1370
        %vm1375 = vcmask 64512
        %v1377 = vsel %vm1375, %v1362, 0
        %1379 = vmatprep.subr.mxu0 %v1372
        %1380 = vmatpush1.msra.mxu0 %v1371
        %1381 = vmatprep.subr.mxu0 0.0
        %1382 = vmatpush1.msra.mxu0 0.0
        %1383 = vmatprep.subr.mxu0 0.0
        %1384 = vmatpush1.msra.mxu0 0.0
        %1385 = vmatprep.subr.mxu0 0.0
        %1386 = vmatpush1.msra.mxu0 0.0
        %1387 = vmatprep.subr.mxu0 0.0
        %1388 = vmatpush1.msra.mxu0 0.0
        %1389 = vmatprep.subr.mxu0 0.0
        %1390 = vmatpush1.msra.mxu0 0.0
        %1391 = vmatprep.subr.mxu0 0.0
        %1392 = vmatpush1.msra.mxu0 0.0
        %1393 = vmatprep.subr.mxu0 0.0
        %1394 = vmatpush1.msra.mxu0 0.0
        %1395 = vmatprep.subr.mxu0 0.0
        %1396 = vmatpush1.msra.mxu0 0.0
        %1397 = vmatprep.subr.mxu0 0.0
        %1398 = vmatpush1.msra.mxu0 0.0
        %1399 = vmatprep.subr.mxu0 0.0
        %1400 = vmatpush1.msra.mxu0 0.0
        %1401 = vmatprep.subr.mxu0 0.0
        %1402 = vmatpush1.msra.mxu0 0.0
        %1403 = vmatprep.subr.mxu0 0.0
        %1404 = vmatpush1.msra.mxu0 0.0
        %1405 = vmatprep.subr.mxu0 0.0
        %1406 = vmatpush1.msra.mxu0 0.0
        %1407 = vmatprep.subr.mxu0 0.0
        %1408 = vmatpush1.msra.mxu0 0.0
        %1409 = vmatprep.subr.mxu0 0.0
        %1410 = vmatpush1.msra.mxu0 0.0
        %1411 = vmatprep.subr.mxu0 0.0
        %1412 = vmatpush1.msra.mxu0 0.0
        %1413 = vmatprep.subr.mxu0 0.0
        %1414 = vmatpush1.msra.mxu0 0.0
        %1415 = vmatprep.subr.mxu0 0.0
        %1416 = vmatpush1.msra.mxu0 0.0
        %1417 = vmatprep.subr.mxu0 0.0
        %1418 = vmatpush1.msra.mxu0 0.0
        %1419 = vmatprep.subr.mxu0 0.0
        %1420 = vmatpush1.msra.mxu0 0.0
        %1421 = vmatprep.subr.mxu0 0.0
        %1422 = vmatpush1.msra.mxu0 0.0
        %1423 = vmatprep.subr.mxu0 0.0
        %1424 = vmatpush1.msra.mxu0 0.0
        %1425 = vmatprep.subr.mxu0 0.0
        %1426 = vmatpush1.msra.mxu0 0.0
        %1427 = vmatprep.subr.mxu0 0.0
        %1428 = vmatpush1.msra.mxu0 0.0
        %1429 = vmatprep.subr.mxu0 0.0
        %1430 = vmatpush1.msra.mxu0 0.0
        %1431 = vmatprep.subr.mxu0 0.0
        %1432 = vmatpush1.msra.mxu0 0.0
        %1433 = vmatprep.subr.mxu0 0.0
        %1434 = vmatpush1.msra.mxu0 0.0
        %1435 = vmatprep.subr.mxu0 0.0
        %1436 = vmatpush1.msra.mxu0 0.0
        %1437 = vmatprep.subr.mxu0 0.0
        %1438 = vmatpush1.msra.mxu0 0.0
        %1439 = vmatprep.subr.mxu0 0.0
        %1440 = vmatpush1.msra.mxu0 0.0
        %1441 = vmatprep.subr.mxu0 0.0
        %1442 = vmatpush1.msra.mxu0 0.0
        %1443 = vmatprep.mubr.f32.mxu0 0.0
        %1444 = vmatmul.mubr.f32.gmra.mrb[0].mxu0 %v1377
        %v1445 = vpop.f32.mrb[0].mxu0
        %v1446 = vadd.f32 0.0, %v1445
        %v1447 = vpop.f32.mrb[0].mxu0
        %v1448 = vadd.f32 0.0, %v1447
        %1449 = vdwg.mxu0
        %v1451 = vsel %vm1375, %v1360, 0
        %1453 = vmatprep.subr.mxu0 %v1332
        %1454 = vmatpush1.msra.mxu0 %v1336
        %1455 = vmatprep.subr.mxu0 0.0
        %1456 = vmatpush1.msra.mxu0 0.0
        %1457 = vmatprep.subr.mxu0 0.0
        %1458 = vmatpush1.msra.mxu0 0.0
        %1459 = vmatprep.subr.mxu0 0.0
        %1460 = vmatpush1.msra.mxu0 0.0
        %1461 = vmatprep.subr.mxu0 0.0
        %1462 = vmatpush1.msra.mxu0 0.0
        %1463 = vmatprep.subr.mxu0 0.0
        %1464 = vmatpush1.msra.mxu0 0.0
        %1465 = vmatprep.subr.mxu0 0.0
        %1466 = vmatpush1.msra.mxu0 0.0
        %1467 = vmatprep.subr.mxu0 0.0
        %1468 = vmatpush1.msra.mxu0 0.0
        %1469 = vmatprep.subr.mxu0 0.0
        %1470 = vmatpush1.msra.mxu0 0.0
        %1471 = vmatprep.subr.mxu0 0.0
        %1472 = vmatpush1.msra.mxu0 0.0
        %1473 = vmatprep.subr.mxu0 0.0
        %1474 = vmatpush1.msra.mxu0 0.0
        %1475 = vmatprep.subr.mxu0 0.0
        %1476 = vmatpush1.msra.mxu0 0.0
        %1477 = vmatprep.subr.mxu0 0.0
        %1478 = vmatpush1.msra.mxu0 0.0
        %1479 = vmatprep.subr.mxu0 0.0
        %1480 = vmatpush1.msra.mxu0 0.0
        %1481 = vmatprep.subr.mxu0 0.0
        %1482 = vmatpush1.msra.mxu0 0.0
        %1483 = vmatprep.subr.mxu0 0.0
        %1484 = vmatpush1.msra.mxu0 0.0
        %1485 = vmatprep.subr.mxu0 0.0
        %1486 = vmatpush1.msra.mxu0 0.0
        %1487 = vmatprep.subr.mxu0 0.0
        %1488 = vmatpush1.msra.mxu0 0.0
        %1489 = vmatprep.subr.mxu0 0.0
        %1490 = vmatpush1.msra.mxu0 0.0
        %1491 = vmatprep.subr.mxu0 0.0
        %1492 = vmatpush1.msra.mxu0 0.0
        %1493 = vmatprep.subr.mxu0 0.0
        %1494 = vmatpush1.msra.mxu0 0.0
        %1495 = vmatprep.subr.mxu0 0.0
        %1496 = vmatpush1.msra.mxu0 0.0
        %1497 = vmatprep.subr.mxu0 0.0
        %1498 = vmatpush1.msra.mxu0 0.0
        %1499 = vmatprep.subr.mxu0 0.0
        %1500 = vmatpush1.msra.mxu0 0.0
        %1501 = vmatprep.subr.mxu0 0.0
        %1502 = vmatpush1.msra.mxu0 0.0
        %1503 = vmatprep.subr.mxu0 0.0
        %1504 = vmatpush1.msra.mxu0 0.0
        %1505 = vmatprep.subr.mxu0 0.0
        %1506 = vmatpush1.msra.mxu0 0.0
        %1507 = vmatprep.subr.mxu0 0.0
        %1508 = vmatpush1.msra.mxu0 0.0
        %1509 = vmatprep.subr.mxu0 0.0
        %1510 = vmatpush1.msra.mxu0 0.0
        %1511 = vmatprep.subr.mxu0 0.0
        %1512 = vmatpush1.msra.mxu0 0.0
        %1513 = vmatprep.subr.mxu0 0.0
        %1514 = vmatpush1.msra.mxu0 0.0
        %1515 = vmatprep.subr.mxu0 0.0
        %1516 = vmatpush1.msra.mxu0 0.0
        %1517 = vmatprep.mubr.f32.mxu0 0.0
        %1518 = vmatmul.mubr.f32.gmra.mrb[0].mxu0 %v1451
        %v1519 = vpop.f32.mrb[0].mxu0
        %v1520 = vadd.f32 %v1446, %v1519
        %v1521 = vpop.f32.mrb[0].mxu0
        %v1522 = vadd.f32 %v1448, %v1521
        %1523 = vdwg.mxu0
        %s1524 = scalar_lea.vmem %s6, 16
        %v1525 = vld [vmem:[%s1524] sm:$0xff]
        %1528 = vrot.lane.b32.xlu0 %v1358, 126
        %v1529 = vpop.permute.xlu0 %1528
        %1530 = vrot.lane.b32.xlu0 %v1355, 126
        %v1531 = vpop.permute.xlu0 %1530
        %1532 = vrot.lane.b32.xlu0 %v1359, 126
        %v1533 = vpop.permute.xlu0 %1532
        %v1534 = vsel %vm676, %v1529, %v1531
        %v1535 = vsel %vm676, %v1531, %v1533
        %v1539 = vsel %vm1375, %v1525, 0
        %1541 = vmatprep.subr.mxu0 %v1535
        %1542 = vmatpush1.msra.mxu0 %v1534
        %1543 = vmatprep.subr.mxu0 0.0
        %1544 = vmatpush1.msra.mxu0 0.0
        %1545 = vmatprep.subr.mxu0 0.0
        %1546 = vmatpush1.msra.mxu0 0.0
        %1547 = vmatprep.subr.mxu0 0.0
        %1548 = vmatpush1.msra.mxu0 0.0
        %1549 = vmatprep.subr.mxu0 0.0
        %1550 = vmatpush1.msra.mxu0 0.0
        %1551 = vmatprep.subr.mxu0 0.0
        %1552 = vmatpush1.msra.mxu0 0.0
        %1553 = vmatprep.subr.mxu0 0.0
        %1554 = vmatpush1.msra.mxu0 0.0
        %1555 = vmatprep.subr.mxu0 0.0
        %1556 = vmatpush1.msra.mxu0 0.0
        %1557 = vmatprep.subr.mxu0 0.0
        %1558 = vmatpush1.msra.mxu0 0.0
        %1559 = vmatprep.subr.mxu0 0.0
        %1560 = vmatpush1.msra.mxu0 0.0
        %1561 = vmatprep.subr.mxu0 0.0
        %1562 = vmatpush1.msra.mxu0 0.0
        %1563 = vmatprep.subr.mxu0 0.0
        %1564 = vmatpush1.msra.mxu0 0.0
        %1565 = vmatprep.subr.mxu0 0.0
        %1566 = vmatpush1.msra.mxu0 0.0
        %1567 = vmatprep.subr.mxu0 0.0
        %1568 = vmatpush1.msra.mxu0 0.0
        %1569 = vmatprep.subr.mxu0 0.0
        %1570 = vmatpush1.msra.mxu0 0.0
        %1571 = vmatprep.subr.mxu0 0.0
        %1572 = vmatpush1.msra.mxu0 0.0
        %1573 = vmatprep.subr.mxu0 0.0
        %1574 = vmatpush1.msra.mxu0 0.0
        %1575 = vmatprep.subr.mxu0 0.0
        %1576 = vmatpush1.msra.mxu0 0.0
        %1577 = vmatprep.subr.mxu0 0.0
        %1578 = vmatpush1.msra.mxu0 0.0
        %1579 = vmatprep.subr.mxu0 0.0
        %1580 = vmatpush1.msra.mxu0 0.0
        %1581 = vmatprep.subr.mxu0 0.0
        %1582 = vmatpush1.msra.mxu0 0.0
        %1583 = vmatprep.subr.mxu0 0.0
        %1584 = vmatpush1.msra.mxu0 0.0
        %1585 = vmatprep.subr.mxu0 0.0
        %1586 = vmatpush1.msra.mxu0 0.0
        %1587 = vmatprep.subr.mxu0 0.0
        %1588 = vmatpush1.msra.mxu0 0.0
        %1589 = vmatprep.subr.mxu0 0.0
        %1590 = vmatpush1.msra.mxu0 0.0
        %1591 = vmatprep.subr.mxu0 0.0
        %1592 = vmatpush1.msra.mxu0 0.0
        %1593 = vmatprep.subr.mxu0 0.0
        %1594 = vmatpush1.msra.mxu0 0.0
        %1595 = vmatprep.subr.mxu0 0.0
        %1596 = vmatpush1.msra.mxu0 0.0
        %1597 = vmatprep.subr.mxu0 0.0
        %1598 = vmatpush1.msra.mxu0 0.0
        %1599 = vmatprep.subr.mxu0 0.0
        %1600 = vmatpush1.msra.mxu0 0.0
        %1601 = vmatprep.subr.mxu0 0.0
        %1602 = vmatpush1.msra.mxu0 0.0
        %1603 = vmatprep.subr.mxu0 0.0
        %1604 = vmatpush1.msra.mxu0 0.0
        %1605 = vmatprep.mubr.f32.mxu0 0.0
        %1606 = vmatmul.mubr.f32.gmra.mrb[0].mxu0 %v1539
        %v1607 = vpop.f32.mrb[0].mxu0
        %v1608 = vadd.f32 0.0, %v1607
        %v1609 = vpop.f32.mrb[0].mxu0
        %v1610 = vadd.f32 0.0, %v1609
        %1611 = vdwg.mxu0
        %v1612 = vadd.f32 %v1520, %v1608
        %v1613 = vadd.f32 %v1522, %v1610
        %s1614 = scalar_lea.vmem %s6, 24
        %v1615 = vld [vmem:[%s1614] sm:$0xff]
        %1618 = vrot.lane.b32.xlu0 %v1336, 112
        %v1619 = vpop.permute.xlu0 %1618
        %1620 = vrot.lane.b32.xlu0 %v1332, 112
        %v1621 = vpop.permute.xlu0 %1620
        %1622 = vrot.lane.b32.xlu0 %v1337, 112
        %v1623 = vpop.permute.xlu0 %1622
        %v1624 = vsel %vm768, %v1619, %v1621
        %v1625 = vsel %vm768, %v1621, %v1623
        %v1629 = vsel %vm1375, %v1615, 0
        %1631 = vmatprep.subr.mxu0 %v1625
        %1632 = vmatpush1.msra.mxu0 %v1624
        %1633 = vmatprep.subr.mxu0 0.0
        %1634 = vmatpush1.msra.mxu0 0.0
        %1635 = vmatprep.subr.mxu0 0.0
        %1636 = vmatpush1.msra.mxu0 0.0
        %1637 = vmatprep.subr.mxu0 0.0
        %1638 = vmatpush1.msra.mxu0 0.0
        %1639 = vmatprep.subr.mxu0 0.0
        %1640 = vmatpush1.msra.mxu0 0.0
        %1641 = vmatprep.subr.mxu0 0.0
        %1642 = vmatpush1.msra.mxu0 0.0
        %1643 = vmatprep.subr.mxu0 0.0
        %1644 = vmatpush1.msra.mxu0 0.0
        %1645 = vmatprep.subr.mxu0 0.0
        %1646 = vmatpush1.msra.mxu0 0.0
        %1647 = vmatprep.subr.mxu0 0.0
        %1648 = vmatpush1.msra.mxu0 0.0
        %1649 = vmatprep.subr.mxu0 0.0
        %1650 = vmatpush1.msra.mxu0 0.0
        %1651 = vmatprep.subr.mxu0 0.0
        %1652 = vmatpush1.msra.mxu0 0.0
        %1653 = vmatprep.subr.mxu0 0.0
        %1654 = vmatpush1.msra.mxu0 0.0
        %1655 = vmatprep.subr.mxu0 0.0
        %1656 = vmatpush1.msra.mxu0 0.0
        %1657 = vmatprep.subr.mxu0 0.0
        %1658 = vmatpush1.msra.mxu0 0.0
        %1659 = vmatprep.subr.mxu0 0.0
        %1660 = vmatpush1.msra.mxu0 0.0
        %1661 = vmatprep.subr.mxu0 0.0
        %1662 = vmatpush1.msra.mxu0 0.0
        %1663 = vmatprep.subr.mxu0 0.0
        %1664 = vmatpush1.msra.mxu0 0.0
        %1665 = vmatprep.subr.mxu0 0.0
        %1666 = vmatpush1.msra.mxu0 0.0
        %1667 = vmatprep.subr.mxu0 0.0
        %1668 = vmatpush1.msra.mxu0 0.0
        %1669 = vmatprep.subr.mxu0 0.0
        %1670 = vmatpush1.msra.mxu0 0.0
        %1671 = vmatprep.subr.mxu0 0.0
        %1672 = vmatpush1.msra.mxu0 0.0
        %1673 = vmatprep.subr.mxu0 0.0
        %1674 = vmatpush1.msra.mxu0 0.0
        %1675 = vmatprep.subr.mxu0 0.0
        %1676 = vmatpush1.msra.mxu0 0.0
        %1677 = vmatprep.subr.mxu0 0.0
        %1678 = vmatpush1.msra.mxu0 0.0
        %1679 = vmatprep.subr.mxu0 0.0
        %1680 = vmatpush1.msra.mxu0 0.0
        %1681 = vmatprep.subr.mxu0 0.0
        %1682 = vmatpush1.msra.mxu0 0.0
        %1683 = vmatprep.subr.mxu0 0.0
        %1684 = vmatpush1.msra.mxu0 0.0
        %1685 = vmatprep.subr.mxu0 0.0
        %1686 = vmatpush1.msra.mxu0 0.0
        %1687 = vmatprep.subr.mxu0 0.0
        %1688 = vmatpush1.msra.mxu0 0.0
        %1689 = vmatprep.subr.mxu0 0.0
        %1690 = vmatpush1.msra.mxu0 0.0
        %1691 = vmatprep.subr.mxu0 0.0
        %1692 = vmatpush1.msra.mxu0 0.0
        %1693 = vmatprep.subr.mxu0 0.0
        %1694 = vmatpush1.msra.mxu0 0.0
        %1695 = vmatprep.mubr.f32.mxu0 0.0
        %1696 = vmatmul.mubr.f32.gmra.mrb[0].mxu0 %v1629
        %v1697 = vpop.f32.mrb[0].mxu0
        %v1698 = vadd.f32 0.0, %v1697
        %v1699 = vpop.f32.mrb[0].mxu0
        %v1700 = vadd.f32 0.0, %v1699
        %1701 = vdwg.mxu0
        %v1702 = vadd.f32 %v1612, %v1698
        %v1703 = vadd.f32 %v1613, %v1700
        %s1704 = scalar_lea.vmem %s6, 32
        %v1705 = vld [vmem:[%s1704] sm:$0xff]
        %1706 = vrot.lane.b32.xlu0 %v1347, 111
        %v1707 = vpop.permute.xlu0 %1706
        %1708 = vrot.lane.b32.xlu0 %v1344, 111
        %v1709 = vpop.permute.xlu0 %1708
        %1710 = vrot.lane.b32.xlu0 %v1348, 111
        %v1711 = vpop.permute.xlu0 %1710
        %v1712 = vsel %vm859, %v1707, %v1709
        %v1713 = vsel %vm859, %v1709, %v1711
        %v1717 = vsel %vm1375, %v1705, 0
        %1719 = vmatprep.subr.mxu0 %v1713
        %1720 = vmatpush1.msra.mxu0 %v1712
        %1721 = vmatprep.subr.mxu0 0.0
        %1722 = vmatpush1.msra.mxu0 0.0
        %1723 = vmatprep.subr.mxu0 0.0
        %1724 = vmatpush1.msra.mxu0 0.0
        %1725 = vmatprep.subr.mxu0 0.0
        %1726 = vmatpush1.msra.mxu0 0.0
        %1727 = vmatprep.subr.mxu0 0.0
        %1728 = vmatpush1.msra.mxu0 0.0
        %1729 = vmatprep.subr.mxu0 0.0
        %1730 = vmatpush1.msra.mxu0 0.0
        %1731 = vmatprep.subr.mxu0 0.0
        %1732 = vmatpush1.msra.mxu0 0.0
        %1733 = vmatprep.subr.mxu0 0.0
        %1734 = vmatpush1.msra.mxu0 0.0
        %1735 = vmatprep.subr.mxu0 0.0
        %1736 = vmatpush1.msra.mxu0 0.0
        %1737 = vmatprep.subr.mxu0 0.0
        %1738 = vmatpush1.msra.mxu0 0.0
        %1739 = vmatprep.subr.mxu0 0.0
        %1740 = vmatpush1.msra.mxu0 0.0
        %1741 = vmatprep.subr.mxu0 0.0
        %1742 = vmatpush1.msra.mxu0 0.0
        %1743 = vmatprep.subr.mxu0 0.0
        %1744 = vmatpush1.msra.mxu0 0.0
        %1745 = vmatprep.subr.mxu0 0.0
        %1746 = vmatpush1.msra.mxu0 0.0
        %1747 = vmatprep.subr.mxu0 0.0
        %1748 = vmatpush1.msra.mxu0 0.0
        %1749 = vmatprep.subr.mxu0 0.0
        %1750 = vmatpush1.msra.mxu0 0.0
        %1751 = vmatprep.subr.mxu0 0.0
        %1752 = vmatpush1.msra.mxu0 0.0
        %1753 = vmatprep.subr.mxu0 0.0
        %1754 = vmatpush1.msra.mxu0 0.0
        %1755 = vmatprep.subr.mxu0 0.0
        %1756 = vmatpush1.msra.mxu0 0.0
        %1757 = vmatprep.subr.mxu0 0.0
        %1758 = vmatpush1.msra.mxu0 0.0
        %1759 = vmatprep.subr.mxu0 0.0
        %1760 = vmatpush1.msra.mxu0 0.0
        %1761 = vmatprep.subr.mxu0 0.0
        %1762 = vmatpush1.msra.mxu0 0.0
        %1763 = vmatprep.subr.mxu0 0.0
        %1764 = vmatpush1.msra.mxu0 0.0
        %1765 = vmatprep.subr.mxu0 0.0
        %1766 = vmatpush1.msra.mxu0 0.0
        %1767 = vmatprep.subr.mxu0 0.0
        %1768 = vmatpush1.msra.mxu0 0.0
        %1769 = vmatprep.subr.mxu0 0.0
        %1770 = vmatpush1.msra.mxu0 0.0
        %1771 = vmatprep.subr.mxu0 0.0
        %1772 = vmatpush1.msra.mxu0 0.0
        %1773 = vmatprep.subr.mxu0 0.0
        %1774 = vmatpush1.msra.mxu0 0.0
        %1775 = vmatprep.subr.mxu0 0.0
        %1776 = vmatpush1.msra.mxu0 0.0
        %1777 = vmatprep.subr.mxu0 0.0
        %1778 = vmatpush1.msra.mxu0 0.0
        %1779 = vmatprep.subr.mxu0 0.0
        %1780 = vmatpush1.msra.mxu0 0.0
        %1781 = vmatprep.subr.mxu0 0.0
        %1782 = vmatpush1.msra.mxu0 0.0
        %1783 = vmatprep.mubr.f32.mxu0 0.0
        %1784 = vmatmul.mubr.f32.gmra.mrb[0].mxu0 %v1717
        %v1785 = vpop.f32.mrb[0].mxu0
        %v1786 = vadd.f32 0.0, %v1785
        %v1787 = vpop.f32.mrb[0].mxu0
        %v1788 = vadd.f32 0.0, %v1787
        %1789 = vdwg.mxu0
        %v1790 = vadd.f32 %v1702, %v1786
        %v1791 = vadd.f32 %v1703, %v1788
        %s1792 = scalar_lea.vmem %s6, 40
        %v1793 = vld [vmem:[%s1792] sm:$0xff]
        %1794 = vrot.lane.b32.xlu0 %v1358, 110
        %v1795 = vpop.permute.xlu0 %1794
        %1796 = vrot.lane.b32.xlu0 %v1355, 110
        %v1797 = vpop.permute.xlu0 %1796
        %1798 = vrot.lane.b32.xlu0 %v1359, 110
        %v1799 = vpop.permute.xlu0 %1798
        %v1800 = vsel %vm950, %v1795, %v1797
        %v1801 = vsel %vm950, %v1797, %v1799
        %v1805 = vsel %vm1375, %v1793, 0
        %1807 = vmatprep.subr.mxu0 %v1801
        %1808 = vmatpush1.msra.mxu0 %v1800
        %1809 = vmatprep.subr.mxu0 0.0
        %1810 = vmatpush1.msra.mxu0 0.0
        %1811 = vmatprep.subr.mxu0 0.0
        %1812 = vmatpush1.msra.mxu0 0.0
        %1813 = vmatprep.subr.mxu0 0.0
        %1814 = vmatpush1.msra.mxu0 0.0
        %1815 = vmatprep.subr.mxu0 0.0
        %1816 = vmatpush1.msra.mxu0 0.0
        %1817 = vmatprep.subr.mxu0 0.0
        %1818 = vmatpush1.msra.mxu0 0.0
        %1819 = vmatprep.subr.mxu0 0.0
        %1820 = vmatpush1.msra.mxu0 0.0
        %1821 = vmatprep.subr.mxu0 0.0
        %1822 = vmatpush1.msra.mxu0 0.0
        %1823 = vmatprep.subr.mxu0 0.0
        %1824 = vmatpush1.msra.mxu0 0.0
        %1825 = vmatprep.subr.mxu0 0.0
        %1826 = vmatpush1.msra.mxu0 0.0
        %1827 = vmatprep.subr.mxu0 0.0
        %1828 = vmatpush1.msra.mxu0 0.0
        %1829 = vmatprep.subr.mxu0 0.0
        %1830 = vmatpush1.msra.mxu0 0.0
        %1831 = vmatprep.subr.mxu0 0.0
        %1832 = vmatpush1.msra.mxu0 0.0
        %1833 = vmatprep.subr.mxu0 0.0
        %1834 = vmatpush1.msra.mxu0 0.0
        %1835 = vmatprep.subr.mxu0 0.0
        %1836 = vmatpush1.msra.mxu0 0.0
        %1837 = vmatprep.subr.mxu0 0.0
        %1838 = vmatpush1.msra.mxu0 0.0
        %1839 = vmatprep.subr.mxu0 0.0
        %1840 = vmatpush1.msra.mxu0 0.0
        %1841 = vmatprep.subr.mxu0 0.0
        %1842 = vmatpush1.msra.mxu0 0.0
        %1843 = vmatprep.subr.mxu0 0.0
        %1844 = vmatpush1.msra.mxu0 0.0
        %1845 = vmatprep.subr.mxu0 0.0
        %1846 = vmatpush1.msra.mxu0 0.0
        %1847 = vmatprep.subr.mxu0 0.0
        %1848 = vmatpush1.msra.mxu0 0.0
        %1849 = vmatprep.subr.mxu0 0.0
        %1850 = vmatpush1.msra.mxu0 0.0
        %1851 = vmatprep.subr.mxu0 0.0
        %1852 = vmatpush1.msra.mxu0 0.0
        %1853 = vmatprep.subr.mxu0 0.0
        %1854 = vmatpush1.msra.mxu0 0.0
        %1855 = vmatprep.subr.mxu0 0.0
        %1856 = vmatpush1.msra.mxu0 0.0
        %1857 = vmatprep.subr.mxu0 0.0
        %1858 = vmatpush1.msra.mxu0 0.0
        %1859 = vmatprep.subr.mxu0 0.0
        %1860 = vmatpush1.msra.mxu0 0.0
        %1861 = vmatprep.subr.mxu0 0.0
        %1862 = vmatpush1.msra.mxu0 0.0
        %1863 = vmatprep.subr.mxu0 0.0
        %1864 = vmatpush1.msra.mxu0 0.0
        %1865 = vmatprep.subr.mxu0 0.0
        %1866 = vmatpush1.msra.mxu0 0.0
        %1867 = vmatprep.subr.mxu0 0.0
        %1868 = vmatpush1.msra.mxu0 0.0
        %1869 = vmatprep.subr.mxu0 0.0
        %1870 = vmatpush1.msra.mxu0 0.0
        %1871 = vmatprep.mubr.f32.mxu0 0.0
        %1872 = vmatmul.mubr.f32.gmra.mrb[0].mxu0 %v1805
        %v1873 = vpop.f32.mrb[0].mxu0
        %v1874 = vadd.f32 0.0, %v1873
        %v1875 = vpop.f32.mrb[0].mxu0
        %v1876 = vadd.f32 0.0, %v1875
        %1877 = vdwg.mxu0
        %v1878 = vadd.f32 %v1790, %v1874
        %v1879 = vadd.f32 %v1791, %v1876
        %s1880 = scalar_lea.vmem %s6, 48
        %v1881 = vld [vmem:[%s1880] sm:$0xff]
        %1882 = vrot.lane.b32.xlu0 %v1336, 96
        %v1883 = vpop.permute.xlu0 %1882
        %1884 = vrot.lane.b32.xlu0 %v1332, 96
        %v1885 = vpop.permute.xlu0 %1884
        %1886 = vrot.lane.b32.xlu0 %v1337, 96
        %v1887 = vpop.permute.xlu0 %1886
        %v1888 = vsel %vm1041, %v1883, %v1885
        %v1889 = vsel %vm1041, %v1885, %v1887
        %v1893 = vsel %vm1375, %v1881, 0
        %1895 = vmatprep.subr.mxu0 %v1889
        %1896 = vmatpush1.msra.mxu0 %v1888
        %1897 = vmatprep.subr.mxu0 0.0
        %1898 = vmatpush1.msra.mxu0 0.0
        %1899 = vmatprep.subr.mxu0 0.0
        %1900 = vmatpush1.msra.mxu0 0.0
        %1901 = vmatprep.subr.mxu0 0.0
        %1902 = vmatpush1.msra.mxu0 0.0
        %1903 = vmatprep.subr.mxu0 0.0
        %1904 = vmatpush1.msra.mxu0 0.0
        %1905 = vmatprep.subr.mxu0 0.0
        %1906 = vmatpush1.msra.mxu0 0.0
        %1907 = vmatprep.subr.mxu0 0.0
        %1908 = vmatpush1.msra.mxu0 0.0
        %1909 = vmatprep.subr.mxu0 0.0
        %1910 = vmatpush1.msra.mxu0 0.0
        %1911 = vmatprep.subr.mxu0 0.0
        %1912 = vmatpush1.msra.mxu0 0.0
        %1913 = vmatprep.subr.mxu0 0.0
        %1914 = vmatpush1.msra.mxu0 0.0
        %1915 = vmatprep.subr.mxu0 0.0
        %1916 = vmatpush1.msra.mxu0 0.0
        %1917 = vmatprep.subr.mxu0 0.0
        %1918 = vmatpush1.msra.mxu0 0.0
        %1919 = vmatprep.subr.mxu0 0.0
        %1920 = vmatpush1.msra.mxu0 0.0
        %1921 = vmatprep.subr.mxu0 0.0
        %1922 = vmatpush1.msra.mxu0 0.0
        %1923 = vmatprep.subr.mxu0 0.0
        %1924 = vmatpush1.msra.mxu0 0.0
        %1925 = vmatprep.subr.mxu0 0.0
        %1926 = vmatpush1.msra.mxu0 0.0
        %1927 = vmatprep.subr.mxu0 0.0
        %1928 = vmatpush1.msra.mxu0 0.0
        %1929 = vmatprep.subr.mxu0 0.0
        %1930 = vmatpush1.msra.mxu0 0.0
        %1931 = vmatprep.subr.mxu0 0.0
        %1932 = vmatpush1.msra.mxu0 0.0
        %1933 = vmatprep.subr.mxu0 0.0
        %1934 = vmatpush1.msra.mxu0 0.0
        %1935 = vmatprep.subr.mxu0 0.0
        %1936 = vmatpush1.msra.mxu0 0.0
        %1937 = vmatprep.subr.mxu0 0.0
        %1938 = vmatpush1.msra.mxu0 0.0
        %1939 = vmatprep.subr.mxu0 0.0
        %1940 = vmatpush1.msra.mxu0 0.0
        %1941 = vmatprep.subr.mxu0 0.0
        %1942 = vmatpush1.msra.mxu0 0.0
        %1943 = vmatprep.subr.mxu0 0.0
        %1944 = vmatpush1.msra.mxu0 0.0
        %1945 = vmatprep.subr.mxu0 0.0
        %1946 = vmatpush1.msra.mxu0 0.0
        %1947 = vmatprep.subr.mxu0 0.0
        %1948 = vmatpush1.msra.mxu0 0.0
        %1949 = vmatprep.subr.mxu0 0.0
        %1950 = vmatpush1.msra.mxu0 0.0
        %1951 = vmatprep.subr.mxu0 0.0
        %1952 = vmatpush1.msra.mxu0 0.0
        %1953 = vmatprep.subr.mxu0 0.0
        %1954 = vmatpush1.msra.mxu0 0.0
        %1955 = vmatprep.subr.mxu0 0.0
        %1956 = vmatpush1.msra.mxu0 0.0
        %1957 = vmatprep.subr.mxu0 0.0
        %1958 = vmatpush1.msra.mxu0 0.0
        %1959 = vmatprep.mubr.f32.mxu0 0.0
        %1960 = vmatmul.mubr.f32.gmra.mrb[0].mxu0 %v1893
        %v1961 = vpop.f32.mrb[0].mxu0
        %v1962 = vadd.f32 0.0, %v1961
        %v1963 = vpop.f32.mrb[0].mxu0
        %v1964 = vadd.f32 0.0, %v1963
        %1965 = vdwg.mxu0
        %v1966 = vadd.f32 %v1878, %v1962
        %v1967 = vadd.f32 %v1879, %v1964
        %s1968 = scalar_lea.vmem %s6, 56
        %v1969 = vld [vmem:[%s1968] sm:$0xff]
        %1970 = vrot.lane.b32.xlu0 %v1347, 95
        %v1971 = vpop.permute.xlu0 %1970
        %1972 = vrot.lane.b32.xlu0 %v1344, 95
        %v1973 = vpop.permute.xlu0 %1972
        %1974 = vrot.lane.b32.xlu0 %v1348, 95
        %v1975 = vpop.permute.xlu0 %1974
        %v1976 = vsel %vm1132, %v1971, %v1973
        %v1977 = vsel %vm1132, %v1973, %v1975
        %v1981 = vsel %vm1375, %v1969, 0
        %1983 = vmatprep.subr.mxu0 %v1977
        %1984 = vmatpush1.msra.mxu0 %v1976
        %1985 = vmatprep.subr.mxu0 0.0
        %1986 = vmatpush1.msra.mxu0 0.0
        %1987 = vmatprep.subr.mxu0 0.0
        %1988 = vmatpush1.msra.mxu0 0.0
        %1989 = vmatprep.subr.mxu0 0.0
        %1990 = vmatpush1.msra.mxu0 0.0
        %1991 = vmatprep.subr.mxu0 0.0
        %1992 = vmatpush1.msra.mxu0 0.0
        %1993 = vmatprep.subr.mxu0 0.0
        %1994 = vmatpush1.msra.mxu0 0.0
        %1995 = vmatprep.subr.mxu0 0.0
        %1996 = vmatpush1.msra.mxu0 0.0
        %1997 = vmatprep.subr.mxu0 0.0
        %1998 = vmatpush1.msra.mxu0 0.0
        %1999 = vmatprep.subr.mxu0 0.0
        %2000 = vmatpush1.msra.mxu0 0.0
        %2001 = vmatprep.subr.mxu0 0.0
        %2002 = vmatpush1.msra.mxu0 0.0
        %2003 = vmatprep.subr.mxu0 0.0
        %2004 = vmatpush1.msra.mxu0 0.0
        %2005 = vmatprep.subr.mxu0 0.0
        %2006 = vmatpush1.msra.mxu0 0.0
        %2007 = vmatprep.subr.mxu0 0.0
        %2008 = vmatpush1.msra.mxu0 0.0
        %2009 = vmatprep.subr.mxu0 0.0
        %2010 = vmatpush1.msra.mxu0 0.0
        %2011 = vmatprep.subr.mxu0 0.0
        %2012 = vmatpush1.msra.mxu0 0.0
        %2013 = vmatprep.subr.mxu0 0.0
        %2014 = vmatpush1.msra.mxu0 0.0
        %2015 = vmatprep.subr.mxu0 0.0
        %2016 = vmatpush1.msra.mxu0 0.0
        %2017 = vmatprep.subr.mxu0 0.0
        %2018 = vmatpush1.msra.mxu0 0.0
        %2019 = vmatprep.subr.mxu0 0.0
        %2020 = vmatpush1.msra.mxu0 0.0
        %2021 = vmatprep.subr.mxu0 0.0
        %2022 = vmatpush1.msra.mxu0 0.0
        %2023 = vmatprep.subr.mxu0 0.0
        %2024 = vmatpush1.msra.mxu0 0.0
        %2025 = vmatprep.subr.mxu0 0.0
        %2026 = vmatpush1.msra.mxu0 0.0
        %2027 = vmatprep.subr.mxu0 0.0
        %2028 = vmatpush1.msra.mxu0 0.0
        %2029 = vmatprep.subr.mxu0 0.0
        %2030 = vmatpush1.msra.mxu0 0.0
        %2031 = vmatprep.subr.mxu0 0.0
        %2032 = vmatpush1.msra.mxu0 0.0
        %2033 = vmatprep.subr.mxu0 0.0
        %2034 = vmatpush1.msra.mxu0 0.0
        %2035 = vmatprep.subr.mxu0 0.0
        %2036 = vmatpush1.msra.mxu0 0.0
        %2037 = vmatprep.subr.mxu0 0.0
        %2038 = vmatpush1.msra.mxu0 0.0
        %2039 = vmatprep.subr.mxu0 0.0
        %2040 = vmatpush1.msra.mxu0 0.0
        %2041 = vmatprep.subr.mxu0 0.0
        %2042 = vmatpush1.msra.mxu0 0.0
        %2043 = vmatprep.subr.mxu0 0.0
        %2044 = vmatpush1.msra.mxu0 0.0
        %2045 = vmatprep.subr.mxu0 0.0
        %2046 = vmatpush1.msra.mxu0 0.0
        %2047 = vmatprep.mubr.f32.mxu0 0.0
        %2048 = vmatmul.mubr.f32.gmra.mrb[0].mxu0 %v1981
        %v2049 = vpop.f32.mrb[0].mxu0
        %v2050 = vadd.f32 0.0, %v2049
        %v2051 = vpop.f32.mrb[0].mxu0
        %v2052 = vadd.f32 0.0, %v2051
        %2053 = vdwg.mxu0
        %v2054 = vadd.f32 %v1966, %v2050
        %v2055 = vadd.f32 %v1967, %v2052
        %s2056 = scalar_lea.vmem %s6, 64
        %v2057 = vld [vmem:[%s2056] sm:$0xff]
        %2058 = vrot.lane.b32.xlu0 %v1358, 94
        %v2059 = vpop.permute.xlu0 %2058
        %2060 = vrot.lane.b32.xlu0 %v1355, 94
        %v2061 = vpop.permute.xlu0 %2060
        %2062 = vrot.lane.b32.xlu0 %v1359, 94
        %v2063 = vpop.permute.xlu0 %2062
        %v2064 = vsel %vm1223, %v2059, %v2061
        %v2065 = vsel %vm1223, %v2061, %v2063
        %v2069 = vsel %vm1375, %v2057, 0
        %2071 = vmatprep.subr.mxu0 %v2065
        %2072 = vmatpush1.msra.mxu0 %v2064
        %2073 = vmatprep.subr.mxu0 0.0
        %2074 = vmatpush1.msra.mxu0 0.0
        %2075 = vmatprep.subr.mxu0 0.0
        %2076 = vmatpush1.msra.mxu0 0.0
        %2077 = vmatprep.subr.mxu0 0.0
        %2078 = vmatpush1.msra.mxu0 0.0
        %2079 = vmatprep.subr.mxu0 0.0
        %2080 = vmatpush1.msra.mxu0 0.0
        %2081 = vmatprep.subr.mxu0 0.0
        %2082 = vmatpush1.msra.mxu0 0.0
        %2083 = vmatprep.subr.mxu0 0.0
        %2084 = vmatpush1.msra.mxu0 0.0
        %2085 = vmatprep.subr.mxu0 0.0
        %2086 = vmatpush1.msra.mxu0 0.0
        %2087 = vmatprep.subr.mxu0 0.0
        %2088 = vmatpush1.msra.mxu0 0.0
        %2089 = vmatprep.subr.mxu0 0.0
        %2090 = vmatpush1.msra.mxu0 0.0
        %2091 = vmatprep.subr.mxu0 0.0
        %2092 = vmatpush1.msra.mxu0 0.0
        %2093 = vmatprep.subr.mxu0 0.0
        %2094 = vmatpush1.msra.mxu0 0.0
        %2095 = vmatprep.subr.mxu0 0.0
        %2096 = vmatpush1.msra.mxu0 0.0
        %2097 = vmatprep.subr.mxu0 0.0
        %2098 = vmatpush1.msra.mxu0 0.0
        %2099 = vmatprep.subr.mxu0 0.0
        %2100 = vmatpush1.msra.mxu0 0.0
        %2101 = vmatprep.subr.mxu0 0.0
        %2102 = vmatpush1.msra.mxu0 0.0
        %2103 = vmatprep.subr.mxu0 0.0
        %2104 = vmatpush1.msra.mxu0 0.0
        %2105 = vmatprep.subr.mxu0 0.0
        %2106 = vmatpush1.msra.mxu0 0.0
        %2107 = vmatprep.subr.mxu0 0.0
        %2108 = vmatpush1.msra.mxu0 0.0
        %2109 = vmatprep.subr.mxu0 0.0
        %2110 = vmatpush1.msra.mxu0 0.0
        %2111 = vmatprep.subr.mxu0 0.0
        %2112 = vmatpush1.msra.mxu0 0.0
        %2113 = vmatprep.subr.mxu0 0.0
        %2114 = vmatpush1.msra.mxu0 0.0
        %2115 = vmatprep.subr.mxu0 0.0
        %2116 = vmatpush1.msra.mxu0 0.0
        %2117 = vmatprep.subr.mxu0 0.0
        %2118 = vmatpush1.msra.mxu0 0.0
        %2119 = vmatprep.subr.mxu0 0.0
        %2120 = vmatpush1.msra.mxu0 0.0
        %2121 = vmatprep.subr.mxu0 0.0
        %2122 = vmatpush1.msra.mxu0 0.0
        %2123 = vmatprep.subr.mxu0 0.0
        %2124 = vmatpush1.msra.mxu0 0.0
        %2125 = vmatprep.subr.mxu0 0.0
        %2126 = vmatpush1.msra.mxu0 0.0
        %2127 = vmatprep.subr.mxu0 0.0
        %2128 = vmatpush1.msra.mxu0 0.0
        %2129 = vmatprep.subr.mxu0 0.0
        %2130 = vmatpush1.msra.mxu0 0.0
        %2131 = vmatprep.subr.mxu0 0.0
        %2132 = vmatpush1.msra.mxu0 0.0
        %2133 = vmatprep.subr.mxu0 0.0
        %2134 = vmatpush1.msra.mxu0 0.0
        %2135 = vmatprep.mubr.f32.mxu0 0.0
        %2136 = vmatmul.mubr.f32.gmra.mrb[0].mxu0 %v2069
        %v2137 = vpop.f32.mrb[0].mxu0
        %v2138 = vadd.f32 0.0, %v2137
        %v2139 = vpop.f32.mrb[0].mxu0
        %v2140 = vadd.f32 0.0, %v2139
        %2141 = vdwg.mxu0
        %v2142 = vadd.f32 %v2054, %v2138
        %v2143 = vadd.f32 %v2055, %v2140
        %v2144 = vadd.f32 %v2142, %v442
        %v2145 = vadd.f32 %v2143, %v444
        %2146 = vst [vmem:[%s298] sm:$0xff] %v2144
        %2147 = vst [vmem:[%s298 + $0x8] sm:$0xff] %v2145
        %s2148 = sand.u32 %s203, 1
        %s2149 = scalar_lea.sflag [#allocation3], %s2148
        %s2150 = sand.u32 %s203, 1
        %s2151 = smul.addr %s2150, 16
        %s2152 = scalar_lea.vmem [#allocation2], %s2151
        // Predicated region
        $region53: #{tpu_custom_call.1} parent=51 // pred_check
          %p2153 = pneg %p213
        $region54: #{tpu_custom_call.1} parent=51 // pred_check_branch
          %2155 = sbr.rel (%p2153) target = $region56
        $region55: #{tpu_custom_call.1} parent=51 // pred_region
          %s2157 = ssub.s32 256, 256
          %2158 = vsyncadd %s2149, %s2157
          %s2159 = smul.addr %s22, 2
          %s2160 = smul.addr %s2159, 128
          %s2161 = scalar_lea.hbm %s8, %s2160
          %s2163 = sshll.u32 %s2152, 4
          %s2164 = int_to_ptr.vmem [resolvable:$true] %s2163
          %2166 = dma.vmem_to_hbm [thread:$0]  %s2164, 256, %s2161, %s2149
        $region56: #{tpu_custom_call.1} parent=51 // pred_fallthru
          _
      $region52: #{tpu_custom_call.1} parent=5 // pred_fallthru
        _
      %p2167 = scmp.le.s32.totalorder 2, %s17
      // Predicated region
      $region57: #{tpu_custom_call.1} parent=5 // pred_check
        %p2168 = pneg %p2167
      $region58: #{tpu_custom_call.1} parent=5 // pred_check_branch
        %2170 = sbr.rel (%p2168) target = $region60
      $region59: #{tpu_custom_call.1} parent=5 // pred_region
        %s2171 = ssub.s32 %s17, 2
        // Predicated region
        $region61: #{tpu_custom_call.1} parent=59 // pred_check
          %p2172 = pneg %p219
        $region62: #{tpu_custom_call.1} parent=59 // pred_check_branch
          %2174 = sbr.rel (%p2172) target = $region64
        $region63: #{tpu_custom_call.1} parent=59 // pred_region
          %s2175 = sand.u32 %s204, 1
          %s2176 = scalar_lea.sflag [#allocation3], %s2175
          %s2177 = sand.u32 %s204, 1
          %s2178 = smul.addr %s2177, 16
          %s2179 = scalar_lea.vmem [#allocation2], %s2178
          %2180 = dma.done %s2176, 256
        $region64: #{tpu_custom_call.1} parent=59 // pred_fallthru
          _
      $region60: #{tpu_custom_call.1} parent=5 // pred_fallthru
        _
    $region6: #{tpu_custom_call.1} parent=1 // loop_footer
      %s21 = sadd.s32 1, %s17
    $region7: #{tpu_custom_call.1} parent=1 // loop_footer_branch
      %16 = sbr.rel target = $region3
    $region8: #{tpu_custom_call.1} parent=1 // loop_exit
      _
    %2181 = vsyncpa [#allocation3], 1
    %s2182 = scalar_lea.sflag [#allocation3], 1
    %2183 = vsyncpa %s2182, 1

</llo_original>
